<compile_context>
chip_gen: v5e
topology: v5e:2x2
jax: 0.10.0
libtpu: 0.0.40
codegen_flags: <defaults>
</compile_context>

<pallas_src>
import functools

import jax
import jax.numpy as jnp
from jax import lax
from jax.experimental import pallas as pl
from jax.experimental.pallas import tpu as pltpu

SELU_ALPHA = 1.6732632423543772848170429916717
SELU_SCALE = 1.0507009873554804934193349852946


def _round_up(v, m):
    return ((v + m - 1) // m) * m


def _selu(z):
    return SELU_SCALE * jnp.where(z > 0.0, z, SELU_ALPHA * (jnp.exp(z) - 1.0))


def _vmem_capacity_bytes():
    """Physical VMEM per TensorCore (generation-aware); conservative fallback."""
    try:
        info = pltpu.get_tpu_info()
        cap = getattr(info, "vmem_capacity_bytes", None)
        if cap:
            return int(cap)
    except Exception:
        pass
    return 64 * 1024 * 1024          # v7x-sized fallback: safe on every generation


def _plan_tiles(n, fw, nw, n_wide, budget):
    """Pick (n_pad, tile_n, est_bytes).

    Prefers a single row tile (adjacency fully VMEM resident, DMA'd from HBM exactly
    once for all stages); otherwise picks the largest row tile whose double-buffered
    adj/scale blocks plus the whole-resident activations, outputs and weights fit the
    VMEM budget.
    """
    def resident(n_pad):
        return (n_pad * fw * 2                     # padded features (bf16)
                + 3 * n_pad * nw * 4               # three f32 outputs
                + n_wide * n_pad * fw * 2          # wide ping-pong buffers (bf16)
                + 2 * n_pad * nw * 2               # narrow ping-pong buffers (bf16)
                + 2 * fw * nw * 2 + 2 * nw * nw * 2    # bf16 weights
                + nw * nw * 4 + 2 * nw * 4)        # T + biases (f32)

    def streamed(tile, n_pad):
        # adj row block (bf16) + scale block (f32, lane-padded), both double-buffered
        return 2 * (tile * n_pad * 2 + tile * 128 * 4)

    n8 = _round_up(n, 8)
    est = resident(n8) + streamed(n8, n8)
    if est <= budget:
        return n8, n8, est                         # adjacency fully resident
    for tile in (4096, 2048, 1024, 512, 256, 128, 64, 32, 16):
        n_pad = _round_up(n, tile)
        if tile >= n_pad:
            continue
        est = resident(n_pad) + streamed(tile, n_pad)
        if est <= budget:
            return n_pad, tile, est
    # TODO(synk): for graphs whose whole-resident activations alone exceed VMEM, add an
    # adj-column grid axis with an f32 accumulator so the row tile stays bounded.
    n_pad = _round_up(n, 16)
    return n_pad, 16, resident(n_pad) + streamed(16, n_pad)


# ---------------------------------------------------------------------------
# Fused forward kernel.
# grid = (n_stages, n_row_tiles); stages run sequentially (outer axis), row tiles
# sequentially inside a stage.  Ping-pong VMEM scratch (bf16) carries the activation
# between stages (every A-multiply needs the *full* previous activation, so both grid
# axes stay "arbitrary").
# ---------------------------------------------------------------------------
def _fused_kernel(scale_ref, x_ref, adj_ref, w1l_ref, w1r_ref, b1_ref,
                  w2l_ref, w2r_ref, b2_ref, t_ref,
                  py_ref, pyp_ref, pyt_ref, *bufs,
                  x_steps, y_steps, tile_n, n_classes, n_wide):
    s = pl.program_id(0)                       # stage index (outer, sequential)
    i = pl.program_id(1)                       # row-tile index (inner)
    n_stages = x_steps + 2 + y_steps

    row0 = pl.multiple_of(i * tile_n, tile_n)
    rows = pl.ds(row0, tile_n)

    dinv = scale_ref[:, 0:1]                   # (tile_n, 1) f32  gcn_norm D^-1/2
    invc = scale_ref[:, 1:2]                   # (tile_n, 1) f32  1/neighbour-count
    adj = adj_ref[...]                         # (tile_n, N_pad) bf16 -> native MXU

    wide = list(bufs[:n_wide])                 # (N_pad, FW) bf16 ping-pong
    narrow = list(bufs[n_wide:])               # (N_pad, NW) bf16 ping-pong

    def a_mul(src_ref):
        # Row block of (A @ src): bf16 x bf16 on the MXU, f32 accumulation.
        return jnp.dot(adj, src_ref[...], preferred_element_type=jnp.float32)

    def sage(src_ref, wl_ref, wr_ref, b_ref):
        # SAGEConv (normalize=False, root_weight=True):
        #   mean_aggr(A, v) @ W_l + v @ W_r + b    (two dots; no concat temp)
        agg = invc * a_mul(src_ref)                              # (tile_n, W_in) f32
        z = jnp.dot(agg.astype(jnp.bfloat16), wl_ref[...],
                    preferred_element_type=jnp.float32)
        z = z + jnp.dot(src_ref[rows, :], wr_ref[...],
                        preferred_element_type=jnp.float32)
        return z + b_ref[...]

    def masked_softmax(z):
        # Softmax over the real class columns only (lanes >= n_classes are padding -> 0).
        cols = lax.broadcasted_iota(jnp.int32, z.shape, 1)
        zm = jnp.where(cols < n_classes, z, -jnp.inf)
        m = jnp.max(zm, axis=1, keepdims=True)
        e = jnp.exp(zm - m)
        return e / jnp.sum(e, axis=1, keepdims=True)

    # Static stage plan, dispatched at runtime via pl.when.
    for k in range(n_stages):
        if k < x_steps:                        # ---- KProp over features
            src = x_ref if k == 0 else wide[(k - 1) % n_wide]
            dst = wide[k % n_wide]
            feeds_prop = (k + 1 < x_steps)     # consumer is another propagate?

            @pl.when(s == k)
            def _(src=src, dst=dst, feeds_prop=feeds_prop):
                # src already holds D^-1/2-scaled values -> v = D^-1/2 (A @ src).
                v = dinv * a_mul(src)
                out = dinv * v if feeds_prop else v   # pre-fold scaling for the next step
                dst[rows, :] = out.astype(dst.dtype)

        elif k == x_steps:                     # ---- SAGEConv1 + SELU  (Dropout(0)=id)
            src = x_ref if x_steps == 0 else wide[(x_steps - 1) % n_wide]
            dst = narrow[0]

            @pl.when(s == k)
            def _(src=src, dst=dst):
                h = _selu(sage(src, w1l_ref, w1r_ref, b1_ref))
                dst[rows, :] = h.astype(dst.dtype)

        elif k == x_steps + 1:                 # ---- SAGEConv2 + softmax + @T
            src = narrow[0]
            last = (y_steps == 0)

            @pl.when(s == k)
            def _(src=src, last=last):
                p = masked_softmax(sage(src, w2l_ref, w2r_ref, b2_ref))
                pp = jnp.dot(p, t_ref[...], preferred_element_type=jnp.float32)
                py_ref[rows, :] = p
                pyp_ref[rows, :] = pp
                if last:                       # y_steps == 0: KProp-y is the identity
                    pyt_ref[rows, :] = pp
                else:                          # pre-fold D^-1/2 for the first y-propagate
                    narrow[1][rows, :] = (dinv * pp).astype(narrow[1].dtype)

        else:                                  # ---- KProp over label posteriors
            j = k - (x_steps + 2)
            src = narrow[(j + 1) % 2]
            dst = narrow[j % 2]
            last = (k == n_stages - 1)

            @pl.when(s == k)
            def _(src=src, dst=dst, last=last):
                v = dinv * a_mul(src)
                if last:                       # final step applies the Softmax transform
                    pyt_ref[rows, :] = masked_softmax(v)
                else:
                    dst[rows, :] = (dinv * v).astype(dst.dtype)


# ---------------------------------------------------------------------------
# NodeClassifier (model='sage', dropout=0.0)
# ---------------------------------------------------------------------------
class NodeClassifierPallas:
    def __init__(self, input_dim, num_classes, hidden_dim=16,
                 x_steps=0, y_steps=0, forward_correction=True, key=None):
        k1, k2, k3, k4 = jax.random.split(key, 4)

        def glorot(k, shape):
            lim = (6.0 / (shape[0] + shape[1])) ** 0.5
            return jax.random.uniform(k, shape, jnp.float32, -lim, lim)

        self.input_dim = input_dim
        self.hidden_dim = hidden_dim
        self.num_classes = num_classes
        self.x_steps = int(x_steps)
        self.y_steps = int(y_steps)
        self.forward_correction = forward_correction

        # True-size f32 parameters (also used by the pure-JAX reference in __main__).
        self.w1_l = glorot(k1, (input_dim, hidden_dim))
        self.w1_r = glorot(k2, (input_dim, hidden_dim))
        self.b1 = jnp.zeros((hidden_dim,), jnp.float32)
        self.w2_l = glorot(k3, (hidden_dim, num_classes))
        self.w2_r = glorot(k4, (hidden_dim, num_classes))
        self.b2 = jnp.zeros((num_classes,), jnp.float32)

        # Stage-specific lane widths: wide for the input/KProp-x path, narrow (usually
        # 128) for everything after SAGEConv1.
        self.fw = _round_up(input_dim, 128)
        self.nw = _round_up(max(hidden_dim, num_classes), 128)
        fw, nw = self.fw, self.nw

        def pad_w(w, shape):
            out = jnp.zeros(shape, jnp.float32)
            return out.at[:w.shape[0], :w.shape[1]].set(w).astype(jnp.bfloat16)

        self.w1l_p = pad_w(self.w1_l, (fw, nw))
        self.w1r_p = pad_w(self.w1_r, (fw, nw))
        self.w2l_p = pad_w(self.w2_l, (nw, nw))
        self.w2r_p = pad_w(self.w2_r, (nw, nw))
        self.b1p = jnp.zeros((1, nw), jnp.float32).at[0, :hidden_dim].set(self.b1)
        self.b2p = jnp.zeros((1, nw), jnp.float32).at[0, :num_classes].set(self.b2)

    def __call__(self, x, adj, t_mat):
        n = x.shape[0]
        c = self.num_classes
        fw, nw = self.fw, self.nw
        n_wide = min(self.x_steps, 2)
        n_stages = self.x_steps + 2 + self.y_steps

        # ---- generation-aware VMEM planning --------------------------------------
        phys = _vmem_capacity_bytes()           # 128 MiB on v5e/v6e, 64 MiB on v7x
        budget = int(0.55 * phys)               # headroom for double-buffered residents
        n_pad, tile_n, est = _plan_tiles(n, fw, nw, n_wide, budget)
        n_tiles = n_pad // tile_n
        vmem_limit = int(min(0.9 * phys, max(32 * 1024 * 1024, 2 * est)))

        # ---- host-side prep (no padded f32 adjacency is ever materialized) --------
        xf = x.astype(jnp.float32)
        deg = jnp.sum(adj.astype(jnp.float32), axis=1, keepdims=True)      # (n, 1)
        safe = jnp.maximum(deg, 1.0)
        dinv = jnp.where(deg > 0.0, lax.rsqrt(safe), 0.0)                  # gcn_norm D^-1/2
        invc = jnp.where(deg > 0.0, 1.0 / safe, 0.0)                       # SAGE mean aggr
        scales = jnp.zeros((n_pad, 2), jnp.float32)
        scales = scales.at[:n, 0:1].set(dinv).at[:n, 1:2].set(invc)

        # Pre-fold D^-1/2 into x when the first stage is a KProp propagate.
        x_in = (dinv * xf) if self.x_steps > 0 else xf
        xp = jnp.zeros((n_pad, fw), jnp.bfloat16)
        xp = xp.at[:n, :self.input_dim].set(x_in.astype(jnp.bfloat16))

        # TODO(synk): on bandwidth-bound v5e multi-tile runs, store adj as int8/packed
        # bits in HBM and upcast to bf16 in-kernel to halve the dominant DMA stream.
        adj_b = jnp.zeros((n_pad, n_pad), jnp.bfloat16)
        adj_b = adj_b.at[:n, :n].set(adj.astype(jnp.bfloat16))             # 0/1 exact

        t_used = t_mat if self.forward_correction else jnp.eye(c, dtype=jnp.float32)
        t_pad = jnp.zeros((nw, nw), jnp.float32).at[:c, :c].set(
            t_used.astype(jnp.float32))

        kernel = functools.partial(
            _fused_kernel, x_steps=self.x_steps, y_steps=self.y_steps,
            tile_n=tile_n, n_classes=c, n_wide=n_wide)

        def whole(shape):
            return pl.BlockSpec(shape, lambda *_: (0,) * len(shape))

        in_specs = [
            pl.BlockSpec((tile_n, 2), lambda s, i: (i, 0)),      # D^-1/2, 1/count (tile)
            whole((n_pad, fw)),                                   # padded features (bf16)
            pl.BlockSpec((tile_n, n_pad), lambda s, i: (i, 0)),   # adj row block (bf16)
            whole((fw, nw)), whole((fw, nw)), whole((1, nw)),     # SAGEConv1 Wl, Wr, b
            whole((nw, nw)), whole((nw, nw)), whole((1, nw)),     # SAGEConv2 Wl, Wr, b
            whole((nw, nw)),                                      # label transition T
        ]
        scratch = ([pltpu.VMEM((n_pad, fw), jnp.bfloat16) for _ in range(n_wide)]
                   + [pltpu.VMEM((n_pad, nw), jnp.bfloat16) for _ in range(2)])

        # TODO(synk): on v7x (2 TensorCores) route the inter-stage carry through HBM so
        # the row-tile axis can be marked "parallel"; with VMEM-scratch carry both axes
        # must stay sequential (cross-tile dependency between stages).
        outs = pl.pallas_call(
            kernel,
            out_shape=tuple(jax.ShapeDtypeStruct((n_pad, nw), jnp.float32)
                            for _ in range(3)),
            grid=(n_stages, n_tiles),
            in_specs=in_specs,
            out_specs=tuple(whole((n_pad, nw)) for _ in range(3)),
            scratch_shapes=scratch,
            compiler_params=pltpu.CompilerParams(
                dimension_semantics=("arbitrary", "arbitrary"),
                vmem_limit_bytes=vmem_limit),
        )(scales, xp, adj_b, self.w1l_p, self.w1r_p, self.b1p,
          self.w2l_p, self.w2r_p, self.b2p, t_pad)

        p_y_x, p_yp_x, p_yt_x = (o[:n, :c] for o in outs)
        return p_y_x, p_yp_x, p_yt_x


# ---------------------------------------------------------------------------
# Pure-JAX reference (mirrors the PyTorch forward) for a correctness check.
# ---------------------------------------------------------------------------
def reference_forward(model, x, adj, t_mat):
    dot = functools.partial(jnp.dot, precision=lax.Precision.HIGHEST)
    deg = jnp.sum(adj, axis=1, keepdims=True)
    safe = jnp.maximum(deg, 1.0)
    dinv = jnp.where(deg > 0.0, 1.0 / jnp.sqrt(safe), 0.0)
    invc = jnp.where(deg > 0.0, 1.0 / safe, 0.0)

    def prop(v):
        return dinv * dot(adj, dinv * v)

    def mean_agg(v):
        return invc * dot(adj, v)

    h = x
    for _ in range(model.x_steps):
        h = prop(h)
    h1 = _selu(dot(mean_agg(h), model.w1_l) + dot(h, model.w1_r) + model.b1)
    z = dot(mean_agg(h1), model.w2_l) + dot(h1, model.w2_r) + model.b2
    p_y = jax.nn.softmax(z, axis=1)
    p_yp = dot(p_y, t_mat) if model.forward_correction else p_y
    p_yt = p_yp
    if model.y_steps > 0:
        for _ in range(model.y_steps):
            p_yt = prop(p_yt)
        p_yt = jax.nn.softmax(p_yt, axis=1)
    return p_y, p_yp, p_yt


if __name__ == "__main__":
    key = jax.random.PRNGKey(0)
    k_x, k_adj, k_w = jax.random.split(key, 3)

    N, INPUT_DIM, HIDDEN_DIM, NUM_CLASSES = 32, 8, 16, 4

    # Node features [N, INPUT_DIM]
    x = jax.random.normal(k_x, (N, INPUT_DIM), jnp.float32)

    # Symmetric binary adjacency without self-loops, [N, N]
    rnd = jax.random.uniform(k_adj, (N, N))
    upper = jnp.triu((rnd > 0.8).astype(jnp.float32), k=1)
    adj = upper + upper.T

    # Row-stochastic label-transition matrix T, [C, C]
    eps = 0.2
    t_mat = (1.0 - eps) * jnp.eye(NUM_CLASSES, dtype=jnp.float32) + eps / NUM_CLASSES

    model = NodeClassifierPallas(
        input_dim=INPUT_DIM, num_classes=NUM_CLASSES, hidden_dim=HIDDEN_DIM,
        x_steps=1, y_steps=1, forward_correction=True, key=k_w)

    p_y_x, p_yp_x, p_yt_x = model(x, adj, t_mat)
    jax.block_until_ready((p_y_x, p_yp_x, p_yt_x))

    assert p_y_x.shape == (N, NUM_CLASSES)
    assert p_yp_x.shape == (N, NUM_CLASSES)
    assert p_yt_x.shape == (N, NUM_CLASSES)
    assert bool(jnp.all(jnp.isfinite(p_y_x)))
    assert bool(jnp.all(jnp.isfinite(p_yp_x)))
    assert bool(jnp.all(jnp.isfinite(p_yt_x)))

    # Compare against the f32 pure-JAX reference.  Tolerance covers the bf16 MXU
    # operand rounding (adj is exact 0/1; activations/weights round at ~2^-9 rel).
    r_y, r_yp, r_yt = reference_forward(model, x, adj, t_mat)
    for got, want in ((p_y_x, r_y), (p_yp_x, r_yp), (p_yt_x, r_yt)):
        assert float(jnp.max(jnp.abs(got - want))) < 2e-2

    print("KERNEL_OK")
</pallas_src>

<mosaic_0001>
module attributes {stable_mosaic.version = 11 : i64} {
  func.func @_fused_kernel(%arg0: i32, %arg1: i32, %arg2: memref<32x2xf32, #tpu.memory_space<vmem>>, %arg3: memref<32x128xbf16, #tpu.memory_space<vmem>>, %arg4: memref<32x32xbf16, #tpu.memory_space<vmem>>, %arg5: memref<128x128xbf16, #tpu.memory_space<vmem>>, %arg6: memref<128x128xbf16, #tpu.memory_space<vmem>>, %arg7: memref<1x128xf32, #tpu.memory_space<vmem>>, %arg8: memref<128x128xbf16, #tpu.memory_space<vmem>>, %arg9: memref<128x128xbf16, #tpu.memory_space<vmem>>, %arg10: memref<1x128xf32, #tpu.memory_space<vmem>>, %arg11: memref<128x128xf32, #tpu.memory_space<vmem>>, %arg12: memref<32x128xf32, #tpu.memory_space<vmem>>, %arg13: memref<32x128xf32, #tpu.memory_space<vmem>>, %arg14: memref<32x128xf32, #tpu.memory_space<vmem>>, %arg15: memref<32x128xbf16, #tpu.memory_space<vmem>>, %arg16: memref<32x128xbf16, #tpu.memory_space<vmem>>, %arg17: memref<32x128xbf16, #tpu.memory_space<vmem>>) attributes {dimension_semantics = [#tpu.dimension_semantics<arbitrary>, #tpu.dimension_semantics<arbitrary>], iteration_bounds = array<i64: 4, 1>, scalar_prefetch = 0 : i64, scratch_operands = 3 : i64, tpu.core_type = #tpu.core_type<tc>, window_params = [{transform_indices = @transform_0, window_bounds = array<i64: 32, 2>}, {pipeline_mode = #tpu.pipeline_mode<synchronous>, transform_indices = @transform_1, window_bounds = array<i64: 32, 128>}, {transform_indices = @transform_2, window_bounds = array<i64: 32, 32>}, {pipeline_mode = #tpu.pipeline_mode<synchronous>, transform_indices = @transform_3, window_bounds = array<i64: 128, 128>}, {pipeline_mode = #tpu.pipeline_mode<synchronous>, transform_indices = @transform_4, window_bounds = array<i64: 128, 128>}, {pipeline_mode = #tpu.pipeline_mode<synchronous>, transform_indices = @transform_5, window_bounds = array<i64: 1, 128>}, {pipeline_mode = #tpu.pipeline_mode<synchronous>, transform_indices = @transform_6, window_bounds = array<i64: 128, 128>}, {pipeline_mode = #tpu.pipeline_mode<synchronous>, transform_indices = @transform_7, window_bounds = array<i64: 128, 128>}, {pipeline_mode = #tpu.pipeline_mode<synchronous>, transform_indices = @transform_8, window_bounds = array<i64: 1, 128>}, {pipeline_mode = #tpu.pipeline_mode<synchronous>, transform_indices = @transform_9, window_bounds = array<i64: 128, 128>}, {pipeline_mode = #tpu.pipeline_mode<synchronous>, transform_indices = @transform_10, window_bounds = array<i64: 32, 128>}, {pipeline_mode = #tpu.pipeline_mode<synchronous>, transform_indices = @transform_11, window_bounds = array<i64: 32, 128>}, {pipeline_mode = #tpu.pipeline_mode<synchronous>, transform_indices = @transform_12, window_bounds = array<i64: 32, 128>}]} {
    %c32_i32 = arith.constant 32 : i32
    %0 = arith.muli %arg1, %c32_i32 : i32
    %1 = tpu.assume_multiple %0, 32 : i32
    %c0 = arith.constant 0 : index
    %c0_0 = arith.constant 0 : index
    %2 = vector.load %arg2[%c0, %c0_0] : memref<32x2xf32, #tpu.memory_space<vmem>>, vector<32x1xf32>
    %c0_1 = arith.constant 0 : index
    %c1 = arith.constant 1 : index
    %3 = vector.load %arg2[%c0_1, %c1] : memref<32x2xf32, #tpu.memory_space<vmem>>, vector<32x1xf32>
    %c0_2 = arith.constant 0 : index
    %c0_3 = arith.constant 0 : index
    %4 = vector.load %arg4[%c0_2, %c0_3] : memref<32x32xbf16, #tpu.memory_space<vmem>>, vector<32x32xbf16>
    %c0_i32 = arith.constant 0 : i32
    %5 = arith.cmpi eq, %arg0, %c0_i32 : i32
    %6 = arith.extui %5 : i1 to i32
    %c0_i32_4 = arith.constant 0 : i32
    %7 = arith.cmpi ne, %6, %c0_i32_4 : i32
    scf.if %7 {
      %c0_8 = arith.constant 0 : index
      %c0_9 = arith.constant 0 : index
      %17 = vector.load %arg3[%c0_8, %c0_9] : memref<32x128xbf16, #tpu.memory_space<vmem>>, vector<32x128xbf16>
      %cst = arith.constant dense<0.000000e+00> : vector<32x128xf32>
      %18 = tpu.matmul %4, %17, %cst {dimension_numbers = #tpu.dot_dimension_numbers<[1], [0], [0], [1], [0, 0, 1, 1], [], []>} : vector<32x32xbf16>, vector<32x128xbf16>, vector<32x128xf32> -> vector<32x128xf32>
      %19 = vector.broadcast %2 : vector<32x1xf32> to vector<32x128xf32>
      %20 = arith.mulf %19, %18 : vector<32x128xf32>
      %21 = arith.truncf %20 : vector<32x128xf32> to vector<32x128xbf16>
      %22 = arith.index_cast %1 : i32 to index
      %c0_10 = arith.constant 0 : index
      %23 = vector.load %arg15[%22, %c0_10] : memref<32x128xbf16, #tpu.memory_space<vmem>>, vector<32x128xbf16>
      tpu.vector_store %arg15[%22, %c0_10], %21 {strides = array<i32>} : memref<32x128xbf16, #tpu.memory_space<vmem>>, vector<32x128xbf16>,
    } else {
    }
    %c1_i32 = arith.constant 1 : i32
    %8 = arith.cmpi eq, %arg0, %c1_i32 : i32
    %9 = arith.extui %8 : i1 to i32
    %c0_i32_5 = arith.constant 0 : i32
    %10 = arith.cmpi ne, %9, %c0_i32_5 : i32
    scf.if %10 {
      %c0_8 = arith.constant 0 : index
      %c0_9 = arith.constant 0 : index
      %17 = vector.load %arg15[%c0_8, %c0_9] : memref<32x128xbf16, #tpu.memory_space<vmem>>, vector<32x128xbf16>
      %cst = arith.constant dense<0.000000e+00> : vector<32x128xf32>
      %18 = tpu.matmul %4, %17, %cst {dimension_numbers = #tpu.dot_dimension_numbers<[1], [0], [0], [1], [0, 0, 1, 1], [], []>} : vector<32x32xbf16>, vector<32x128xbf16>, vector<32x128xf32> -> vector<32x128xf32>
      %19 = vector.broadcast %3 : vector<32x1xf32> to vector<32x128xf32>
      %20 = arith.mulf %19, %18 : vector<32x128xf32>
      %21 = arith.truncf %20 : vector<32x128xf32> to vector<32x128xbf16>
      %c0_10 = arith.constant 0 : index
      %c0_11 = arith.constant 0 : index
      %22 = vector.load %arg5[%c0_10, %c0_11] : memref<128x128xbf16, #tpu.memory_space<vmem>>, vector<128x128xbf16>
      %cst_12 = arith.constant dense<0.000000e+00> : vector<32x128xf32>
      %23 = tpu.matmul %21, %22, %cst_12 {dimension_numbers = #tpu.dot_dimension_numbers<[1], [0], [0], [1], [0, 0, 1, 1], [], []>} : vector<32x128xbf16>, vector<128x128xbf16>, vector<32x128xf32> -> vector<32x128xf32>
      %24 = arith.index_cast %1 : i32 to index
      %c0_13 = arith.constant 0 : index
      %25 = vector.load %arg15[%24, %c0_13] : memref<32x128xbf16, #tpu.memory_space<vmem>>, vector<32x128xbf16>
      %c0_14 = arith.constant 0 : index
      %c0_15 = arith.constant 0 : index
      %26 = vector.load %arg6[%c0_14, %c0_15] : memref<128x128xbf16, #tpu.memory_space<vmem>>, vector<128x128xbf16>
      %cst_16 = arith.constant dense<0.000000e+00> : vector<32x128xf32>
      %27 = tpu.matmul %25, %26, %cst_16 {dimension_numbers = #tpu.dot_dimension_numbers<[1], [0], [0], [1], [0, 0, 1, 1], [], []>} : vector<32x128xbf16>, vector<128x128xbf16>, vector<32x128xf32> -> vector<32x128xf32>
      %28 = arith.addf %23, %27 : vector<32x128xf32>
      %c0_17 = arith.constant 0 : index
      %c0_18 = arith.constant 0 : index
      %29 = vector.load %arg7[%c0_17, %c0_18] : memref<1x128xf32, #tpu.memory_space<vmem>>, vector<1x128xf32>
      %30 = vector.broadcast %29 : vector<1x128xf32> to vector<32x128xf32>
      %31 = arith.addf %28, %30 : vector<32x128xf32>
      %cst_19 = arith.constant 0.000000e+00 : f32
      %32 = vector.broadcast %cst_19 : f32 to vector<32x128xf32>
      %33 = arith.cmpf ogt, %31, %32 : vector<32x128xf32>
      %34 = math.exp %31 : vector<32x128xf32>
      %cst_20 = arith.constant 1.000000e+00 : f32
      %35 = vector.broadcast %cst_20 : f32 to vector<32x128xf32>
      %36 = arith.subf %34, %35 : vector<32x128xf32>
      %cst_21 = arith.constant 1.67326319 : f32
      %37 = vector.broadcast %cst_21 : f32 to vector<32x128xf32>
      %38 = arith.mulf %37, %36 : vector<32x128xf32>
      %39 = arith.select %33, %31, %38 : vector<32x128xi1>, vector<32x128xf32>
      %cst_22 = arith.constant 1.05070102 : f32
      %40 = vector.broadcast %cst_22 : f32 to vector<32x128xf32>
      %41 = arith.mulf %40, %39 : vector<32x128xf32>
      %42 = arith.truncf %41 : vector<32x128xf32> to vector<32x128xbf16>
      %43 = arith.index_cast %1 : i32 to index
      %c0_23 = arith.constant 0 : index
      %44 = vector.load %arg16[%43, %c0_23] : memref<32x128xbf16, #tpu.memory_space<vmem>>, vector<32x128xbf16>
      tpu.vector_store %arg16[%43, %c0_23], %42 {strides = array<i32>} : memref<32x128xbf16, #tpu.memory_space<vmem>>, vector<32x128xbf16>,
    } else {
    }
    %c2_i32 = arith.constant 2 : i32
    %11 = arith.cmpi eq, %arg0, %c2_i32 : i32
    %12 = arith.extui %11 : i1 to i32
    %c0_i32_6 = arith.constant 0 : i32
    %13 = arith.cmpi ne, %12, %c0_i32_6 : i32
    scf.if %13 {
      %c0_8 = arith.constant 0 : index
      %c0_9 = arith.constant 0 : index
      %17 = vector.load %arg16[%c0_8, %c0_9] : memref<32x128xbf16, #tpu.memory_space<vmem>>, vector<32x128xbf16>
      %cst = arith.constant dense<0.000000e+00> : vector<32x128xf32>
      %18 = tpu.matmul %4, %17, %cst {dimension_numbers = #tpu.dot_dimension_numbers<[1], [0], [0], [1], [0, 0, 1, 1], [], []>} : vector<32x32xbf16>, vector<32x128xbf16>, vector<32x128xf32> -> vector<32x128xf32>
      %19 = vector.broadcast %3 : vector<32x1xf32> to vector<32x128xf32>
      %20 = arith.mulf %19, %18 : vector<32x128xf32>
      %21 = arith.truncf %20 : vector<32x128xf32> to vector<32x128xbf16>
      %c0_10 = arith.constant 0 : index
      %c0_11 = arith.constant 0 : index
      %22 = vector.load %arg8[%c0_10, %c0_11] : memref<128x128xbf16, #tpu.memory_space<vmem>>, vector<128x128xbf16>
      %cst_12 = arith.constant dense<0.000000e+00> : vector<32x128xf32>
      %23 = tpu.matmul %21, %22, %cst_12 {dimension_numbers = #tpu.dot_dimension_numbers<[1], [0], [0], [1], [0, 0, 1, 1], [], []>} : vector<32x128xbf16>, vector<128x128xbf16>, vector<32x128xf32> -> vector<32x128xf32>
      %24 = arith.index_cast %1 : i32 to index
      %c0_13 = arith.constant 0 : index
      %25 = vector.load %arg16[%24, %c0_13] : memref<32x128xbf16, #tpu.memory_space<vmem>>, vector<32x128xbf16>
      %c0_14 = arith.constant 0 : index
      %c0_15 = arith.constant 0 : index
      %26 = vector.load %arg9[%c0_14, %c0_15] : memref<128x128xbf16, #tpu.memory_space<vmem>>, vector<128x128xbf16>
      %cst_16 = arith.constant dense<0.000000e+00> : vector<32x128xf32>
      %27 = tpu.matmul %25, %26, %cst_16 {dimension_numbers = #tpu.dot_dimension_numbers<[1], [0], [0], [1], [0, 0, 1, 1], [], []>} : vector<32x128xbf16>, vector<128x128xbf16>, vector<32x128xf32> -> vector<32x128xf32>
      %28 = arith.addf %23, %27 : vector<32x128xf32>
      %c0_17 = arith.constant 0 : index
      %c0_18 = arith.constant 0 : index
      %29 = vector.load %arg10[%c0_17, %c0_18] : memref<1x128xf32, #tpu.memory_space<vmem>>, vector<1x128xf32>
      %30 = vector.broadcast %29 : vector<1x128xf32> to vector<32x128xf32>
      %31 = arith.addf %28, %30 : vector<32x128xf32>
      %32 = tpu.iota {dimensions = array<i32: 1>} : vector<32x128xi32>
      %c4_i32 = arith.constant 4 : i32
      %33 = vector.broadcast %c4_i32 : i32 to vector<32x128xi32>
      %34 = arith.cmpi slt, %32, %33 : vector<32x128xi32>
      %cst_19 = arith.constant 0xFF800000 : f32
      %35 = vector.broadcast %cst_19 : f32 to vector<32x128xf32>
      %36 = arith.select %34, %31, %35 : vector<32x128xi1>, vector<32x128xf32>
      %cst_20 = arith.constant dense<0xFF800000> : vector<32xf32>
      %37 = vector.multi_reduction <maximumf>, %36, %cst_20 [1] : vector<32x128xf32> to vector<32xf32>
      %38 = vector.shape_cast %37 : vector<32xf32> to vector<32x1xf32>
      %39 = vector.broadcast %38 : vector<32x1xf32> to vector<32x128xf32>
      %40 = arith.subf %36, %39 : vector<32x128xf32>
      %41 = math.exp %40 : vector<32x128xf32>
      %cst_21 = arith.constant dense<0.000000e+00> : vector<32xf32>
      %42 = vector.multi_reduction <add>, %41, %cst_21 [1] : vector<32x128xf32> to vector<32xf32>
      %43 = vector.shape_cast %42 : vector<32xf32> to vector<32x1xf32>
      %44 = vector.broadcast %43 : vector<32x1xf32> to vector<32x128xf32>
      %45 = arith.divf %41, %44 : vector<32x128xf32>
      %c0_22 = arith.constant 0 : index
      %c0_23 = arith.constant 0 : index
      %46 = vector.load %arg11[%c0_22, %c0_23] : memref<128x128xf32, #tpu.memory_space<vmem>>, vector<128x128xf32>
      %cst_24 = arith.constant dense<0.000000e+00> : vector<32x128xf32>
      %47 = tpu.matmul %45, %46, %cst_24 {dimension_numbers = #tpu.dot_dimension_numbers<[1], [0], [0], [1], [0, 0, 1, 1], [], []>} : vector<32x128xf32>, vector<128x128xf32>, vector<32x128xf32> -> vector<32x128xf32>
      %48 = arith.index_cast %1 : i32 to index
      %c0_25 = arith.constant 0 : index
      %49 = vector.load %arg12[%48, %c0_25] : memref<32x128xf32, #tpu.memory_space<vmem>>, vector<32x128xf32>
      tpu.vector_store %arg12[%48, %c0_25], %45 {strides = array<i32>} : memref<32x128xf32, #tpu.memory_space<vmem>>, vector<32x128xf32>,
      %50 = arith.index_cast %1 : i32 to index
      %c0_26 = arith.constant 0 : index
      %51 = vector.load %arg13[%50, %c0_26] : memref<32x128xf32, #tpu.memory_space<vmem>>, vector<32x128xf32>
      tpu.vector_store %arg13[%50, %c0_26], %47 {strides = array<i32>} : memref<32x128xf32, #tpu.memory_space<vmem>>, vector<32x128xf32>,
      %52 = vector.broadcast %2 : vector<32x1xf32> to vector<32x128xf32>
      %53 = arith.mulf %52, %47 : vector<32x128xf32>
      %54 = arith.truncf %53 : vector<32x128xf32> to vector<32x128xbf16>
      %55 = arith.index_cast %1 : i32 to index
      %c0_27 = arith.constant 0 : index
      %56 = vector.load %arg17[%55, %c0_27] : memref<32x128xbf16, #tpu.memory_space<vmem>>, vector<32x128xbf16>
      tpu.vector_store %arg17[%55, %c0_27], %54 {strides = array<i32>} : memref<32x128xbf16, #tpu.memory_space<vmem>>, vector<32x128xbf16>,
    } else {
    }
    %c3_i32 = arith.constant 3 : i32
    %14 = arith.cmpi eq, %arg0, %c3_i32 : i32
    %15 = arith.extui %14 : i1 to i32
    %c0_i32_7 = arith.constant 0 : i32
    %16 = arith.cmpi ne, %15, %c0_i32_7 : i32
    scf.if %16 {
      %c0_8 = arith.constant 0 : index
      %c0_9 = arith.constant 0 : index
      %17 = vector.load %arg17[%c0_8, %c0_9] : memref<32x128xbf16, #tpu.memory_space<vmem>>, vector<32x128xbf16>
      %cst = arith.constant dense<0.000000e+00> : vector<32x128xf32>
      %18 = tpu.matmul %4, %17, %cst {dimension_numbers = #tpu.dot_dimension_numbers<[1], [0], [0], [1], [0, 0, 1, 1], [], []>} : vector<32x32xbf16>, vector<32x128xbf16>, vector<32x128xf32> -> vector<32x128xf32>
      %19 = vector.broadcast %2 : vector<32x1xf32> to vector<32x128xf32>
      %20 = arith.mulf %19, %18 : vector<32x128xf32>
      %21 = tpu.iota {dimensions = array<i32: 1>} : vector<32x128xi32>
      %c4_i32 = arith.constant 4 : i32
      %22 = vector.broadcast %c4_i32 : i32 to vector<32x128xi32>
      %23 = arith.cmpi slt, %21, %22 : vector<32x128xi32>
      %cst_10 = arith.constant 0xFF800000 : f32
      %24 = vector.broadcast %cst_10 : f32 to vector<32x128xf32>
      %25 = arith.select %23, %20, %24 : vector<32x128xi1>, vector<32x128xf32>
      %cst_11 = arith.constant dense<0xFF800000> : vector<32xf32>
      %26 = vector.multi_reduction <maximumf>, %25, %cst_11 [1] : vector<32x128xf32> to vector<32xf32>
      %27 = vector.shape_cast %26 : vector<32xf32> to vector<32x1xf32>
      %28 = vector.broadcast %27 : vector<32x1xf32> to vector<32x128xf32>
      %29 = arith.subf %25, %28 : vector<32x128xf32>
      %30 = math.exp %29 : vector<32x128xf32>
      %cst_12 = arith.constant dense<0.000000e+00> : vector<32xf32>
      %31 = vector.multi_reduction <add>, %30, %cst_12 [1] : vector<32x128xf32> to vector<32xf32>
      %32 = vector.shape_cast %31 : vector<32xf32> to vector<32x1xf32>
      %33 = vector.broadcast %32 : vector<32x1xf32> to vector<32x128xf32>
      %34 = arith.divf %30, %33 : vector<32x128xf32>
      %35 = arith.index_cast %1 : i32 to index
      %c0_13 = arith.constant 0 : index
      %36 = vector.load %arg14[%35, %c0_13] : memref<32x128xf32, #tpu.memory_space<vmem>>, vector<32x128xf32>
      tpu.vector_store %arg14[%35, %c0_13], %34 {strides = array<i32>} : memref<32x128xf32, #tpu.memory_space<vmem>>, vector<32x128xf32>,
    } else {
    }
    return
  }
  func.func @transform_0(%arg0: i32, %arg1: i32) -> (i32, i32) {
    %c0_i32 = arith.constant 0 : i32
    %c0_i32_0 = arith.constant 0 : i32
    return %arg1, %c0_i32 : i32, i32
  }
  func.func @transform_1(%arg0: i32, %arg1: i32) -> (i32, i32) {
    %c0_i32 = arith.constant 0 : i32
    %c0_i32_0 = arith.constant 0 : i32
    %c0_i32_1 = arith.constant 0 : i32
    return %c0_i32, %c0_i32_0 : i32, i32
  }
  func.func @transform_2(%arg0: i32, %arg1: i32) -> (i32, i32) {
    %c0_i32 = arith.constant 0 : i32
    %c0_i32_0 = arith.constant 0 : i32
    return %arg1, %c0_i32 : i32, i32
  }
  func.func @transform_3(%arg0: i32, %arg1: i32) -> (i32, i32) {
    %c0_i32 = arith.constant 0 : i32
    %c0_i32_0 = arith.constant 0 : i32
    %c0_i32_1 = arith.constant 0 : i32
    return %c0_i32, %c0_i32_0 : i32, i32
  }
  func.func @transform_4(%arg0: i32, %arg1: i32) -> (i32, i32) {
    %c0_i32 = arith.constant 0 : i32
    %c0_i32_0 = arith.constant 0 : i32
    %c0_i32_1 = arith.constant 0 : i32
    return %c0_i32, %c0_i32_0 : i32, i32
  }
  func.func @transform_5(%arg0: i32, %arg1: i32) -> (i32, i32) {
    %c0_i32 = arith.constant 0 : i32
    %c0_i32_0 = arith.constant 0 : i32
    %c0_i32_1 = arith.constant 0 : i32
    return %c0_i32, %c0_i32_0 : i32, i32
  }
  func.func @transform_6(%arg0: i32, %arg1: i32) -> (i32, i32) {
    %c0_i32 = arith.constant 0 : i32
    %c0_i32_0 = arith.constant 0 : i32
    %c0_i32_1 = arith.constant 0 : i32
    return %c0_i32, %c0_i32_0 : i32, i32
  }
  func.func @transform_7(%arg0: i32, %arg1: i32) -> (i32, i32) {
    %c0_i32 = arith.constant 0 : i32
    %c0_i32_0 = arith.constant 0 : i32
    %c0_i32_1 = arith.constant 0 : i32
    return %c0_i32, %c0_i32_0 : i32, i32
  }
  func.func @transform_8(%arg0: i32, %arg1: i32) -> (i32, i32) {
    %c0_i32 = arith.constant 0 : i32
    %c0_i32_0 = arith.constant 0 : i32
    %c0_i32_1 = arith.constant 0 : i32
    return %c0_i32, %c0_i32_0 : i32, i32
  }
  func.func @transform_9(%arg0: i32, %arg1: i32) -> (i32, i32) {
    %c0_i32 = arith.constant 0 : i32
    %c0_i32_0 = arith.constant 0 : i32
    %c0_i32_1 = arith.constant 0 : i32
    return %c0_i32, %c0_i32_0 : i32, i32
  }
  func.func @transform_10(%arg0: i32, %arg1: i32) -> (i32, i32) {
    %c0_i32 = arith.constant 0 : i32
    %c0_i32_0 = arith.constant 0 : i32
    %c0_i32_1 = arith.constant 0 : i32
    return %c0_i32, %c0_i32_0 : i32, i32
  }
  func.func @transform_11(%arg0: i32, %arg1: i32) -> (i32, i32) {
    %c0_i32 = arith.constant 0 : i32
    %c0_i32_0 = arith.constant 0 : i32
    %c0_i32_1 = arith.constant 0 : i32
    return %c0_i32, %c0_i32_0 : i32, i32
  }
  func.func @transform_12(%arg0: i32, %arg1: i32) -> (i32, i32) {
    %c0_i32 = arith.constant 0 : i32
    %c0_i32_0 = arith.constant 0 : i32
    %c0_i32_1 = arith.constant 0 : i32
    return %c0_i32, %c0_i32_0 : i32, i32
  }
}

</mosaic_0001>

<llo_original>
// kernel: tpu_custom_call.1
$region0: #{tpu_custom_call.1}
  #allocation0 [shape = 'u32[]', space=smem, size = 0x4, offset = 0x4, fixed_abs, tag = 'smem constant byte address 0x4 - core index']
  #allocation1 [shape = 'u32[72,128]{1,0:T(1,128)}', space=vmem, size = 0x9000, scoped, tag = 'internal scratch']
  #allocation2 [shape = 'bf16[32,128]{1,0:T(8,128)(2,1)}', space=vmem, size = 0x2000, scoped, tag = 'scratch operand']
  #allocation3 [shape = 'bf16[32,128]{1,0:T(8,128)(2,1)}', space=vmem, size = 0x2000, scoped, tag = 'scratch operand']
  #allocation4 [shape = 'bf16[32,128]{1,0:T(8,128)(2,1)}', space=vmem, size = 0x2000, scoped, tag = 'scratch operand']
  %s0 = inlined_call_operand.vmem [shape: f32[32,2], index: 0, kind: input, shape index: {}]
  %s1 = inlined_call_operand.vmem [shape: bf16[32,128], index: 1, kind: input, shape index: {}]
  %s2 = inlined_call_operand.vmem [shape: bf16[32,32], index: 2, kind: input, shape index: {}]
  %s3 = inlined_call_operand.hbm [shape: bf16[128,128], index: 3, kind: input, shape index: {}]
  %s4 = inlined_call_operand.hbm [shape: bf16[128,128], index: 4, kind: input, shape index: {}]
  %s5 = inlined_call_operand.vmem [shape: f32[1,128], index: 5, kind: input, shape index: {}]
  %s6 = inlined_call_operand.hbm [shape: bf16[128,128], index: 6, kind: input, shape index: {}]
  %s7 = inlined_call_operand.hbm [shape: bf16[128,128], index: 7, kind: input, shape index: {}]
  %s8 = inlined_call_operand.vmem [shape: f32[1,128], index: 8, kind: input, shape index: {}]
  %s9 = inlined_call_operand.hbm [shape: f32[128,128], index: 9, kind: input, shape index: {}]
  %s10 = inlined_call_operand.hbm [shape: f32[32,128], index: 10, kind: output, shape index: {0}]
  %s11 = inlined_call_operand.hbm [shape: f32[32,128], index: 11, kind: output, shape index: {1}]
  %s12 = inlined_call_operand.hbm [shape: f32[32,128], index: 12, kind: output, shape index: {2}]
  %13 = xla_tuple %s10, %s11, %s12
  %s14 = sld [smem:[#allocation0]]
  $region125: #{tpu_custom_call.1} parent=0
    _
  %s16 = ssub.s32 1, %s14
  %s17 = scalar_select 0, %s16, %s14
  $region1: #{tpu_custom_call.1} parent=0
    #allocation5 [shape = 'u8[32768]{0}', space=vmem, size = 0x8000, scoped, tag = 'input window, operand 3, single buffered']
    #allocation6 [shape = 's32[2]{0}', space=sflag, size = 0x8, scoped, tag = 'scoped memory for tpu_custom_call.1']
    #allocation7 [shape = 's32[2]{0}', space=sflag, size = 0x8, scoped, tag = 'scoped memory for tpu_custom_call.1']
    #allocation8 [shape = 'u8[32768]{0}', space=vmem, size = 0x8000, scoped, tag = 'input window, operand 4, single buffered']
    #allocation9 [shape = 's32[1]{0}', space=sflag, size = 0x4, scoped, tag = 'scoped memory for tpu_custom_call.1']
    #allocation10 [shape = 'u8[32768]{0}', space=vmem, size = 0x8000, scoped, tag = 'input window, operand 6, single buffered']
    #allocation11 [shape = 'u8[32768]{0}', space=vmem, size = 0x8000, scoped, tag = 'input window, operand 7, single buffered']
    #allocation12 [shape = 's32[1]{0}', space=sflag, size = 0x4, scoped, tag = 'scoped memory for tpu_custom_call.1']
    #allocation13 [shape = 'u8[65536]{0}', space=vmem, size = 0x10000, scoped, tag = 'input window, operand 9, single buffered']
    #allocation14 [shape = 'u8[16384]{0}', space=vmem, size = 0x4000, scoped, tag = 'output window, operand 0, single buffered']
    #allocation15 [shape = 'u8[16384]{0}', space=vmem, size = 0x4000, scoped, tag = 'output window, operand 1, single buffered']
    #allocation16 [shape = 's32[1]{0}', space=sflag, size = 0x4, scoped, tag = 'scoped memory for tpu_custom_call.1']
    #allocation17 [shape = 'u8[16384]{0}', space=vmem, size = 0x4000, scoped, tag = 'output window, operand 2, single buffered']
    %18 = vsyncpa [#allocation6], 0
    %19 = vsyncpa [#allocation9], 0
    %20 = vsyncpa [#allocation12], 0
    %21 = vsyncpa [#allocation7], 0
    %22 = vsyncpa [#allocation16], 0
    loop: start=0, step=1, limit=6
    $region2: #{tpu_custom_call.1} parent=1 // loop_pre_header
      _
    $region3: #{tpu_custom_call.1} parent=1 // loop_header
      %s24 = sphi 0, %s28
      %p25 = scmp.ge.s32.totalorder %s24, 6
      %s31 = sphi 0, %s43
      %s32 = sphi 0, %s39
      %s33 = sphi 0, %s31
      %s34 = sphi 0, %s32
      %s35 = sphi 0, %s33
      %s36 = sphi 0, %s34
      %s46 = sphi 0, %s48
      %s49 = sphi 0, %s46
      %s50 = sphi 0, %s49
      %s66 = sphi 0, %s50
      %s70 = sphi 0, %s70
      %s72 = sphi 0, %s70
      %s73 = sphi 0, %s72
      %s87 = sphi 0, %s73
      %s93 = sphi 0, %s95
      %s96 = sphi 0, %s93
      %s97 = sphi 0, %s96
      %s113 = sphi 0, %s97
      %s117 = sphi 0, %s117
      %s119 = sphi 0, %s117
      %s120 = sphi 0, %s119
      %s134 = sphi 0, %s120
      %s138 = sphi 0, %s138
      %s140 = sphi 0, %s138
      %s141 = sphi 0, %s140
      %s155 = sphi 0, %s141
      %s159 = sphi 0, %s159
      %s161 = sphi 0, %s159
      %s162 = sphi 0, %s161
      %s176 = sphi 0, %s162
      %s180 = sphi 0, %s180
      %s182 = sphi 0, %s180
      %s183 = sphi 0, %s182
      %s197 = sphi 0, %s183
      %s201 = sphi 0, %s201
      %s203 = sphi 0, %s201
      %s204 = sphi 0, %s203
      %s218 = sphi 0, %s204
      %s222 = sphi 0, %s222
      %s224 = sphi 0, %s222
      %s225 = sphi 0, %s224
      %s239 = sphi 0, %s225
      %s243 = sphi 0, %s243
      %s245 = sphi 0, %s243
      %s246 = sphi 0, %s245
      %s260 = sphi 0, %s246
      %s264 = sphi 0, %s264
      %s266 = sphi 0, %s264
      %s267 = sphi 0, %s266
      %s281 = sphi 0, %s267
      %s285 = sphi 0, %s285
      %s287 = sphi 0, %s285
      %s288 = sphi 0, %s287
      %s302 = sphi 0, %s288
      %s306 = sphi 0, %s306
      %s308 = sphi 0, %s306
      %s309 = sphi 0, %s308
      %s323 = sphi 0, %s309
    $region4: #{tpu_custom_call.1} parent=1 // loop_header_branch
      %27 = sbr.rel (%p25) target = $region8
    $region5: #{tpu_custom_call.1} parent=1 // loop_body
      %s29 = ssub.s32 %s24, 1
      %s30 = ssub.s32 %s24, 2
      %s37 = sadd.s32 1, %s32
      %p38 = scmp.ge.s32.totalorder %s37, 1
      %s39 = scalar_select %p38, 0, %s37
      %s40 = sadd.s32 1, %s31
      %s41 = scalar_select %p38, %s40, %s31
      %p42 = scmp.ge.s32.totalorder %s41, 4
      %s43 = scalar_select %p42, 0, %s41
      %s44 = ssub.s32 %s32, %s39
      %p45 = scmp.eq.s32.totalorder %s44, 0
      %s47 = sadd.s32 %s46, 1
      %s48 = scalar_select %p45, %s46, %s47
      %p51 = pneg %p45
      %p52 = scmp.eq.s32.totalorder %s24, 3
      %p53 = por %p51, %p52
      %p54 = scmp.ne.s32.totalorder %s46, %s49
      %p55 = scmp.eq.s32.totalorder %s24, 0
      %p56 = por %p54, %p55
      %p57 = scmp.ne.s32.totalorder %s46, %s49
      %p58 = scmp.eq.s32.totalorder %s29, 3
      %p59 = por %p57, %p58
      %p60 = scmp.ne.s32.totalorder %s49, %s50
      %p61 = scmp.eq.s32.totalorder %s29, 0
      %p62 = por %p60, %p61
      %p63 = scmp.ne.s32.totalorder %s49, %s50
      %p64 = scmp.eq.s32.totalorder %s30, 3
      %p65 = por %p63, %p64
      %p67 = scmp.ne.s32.totalorder %s50, %s66
      %p68 = scmp.eq.s32.totalorder %s30, 0
      %p69 = por %p67, %p68
      %s71 = sadd.s32 %s70, 1
      %p74 = scmp.eq.s32.totalorder %s24, 3
      %p75 = scmp.ne.s32.totalorder %s70, %s72
      %p76 = scmp.eq.s32.totalorder %s24, 0
      %p77 = por %p75, %p76
      %p78 = scmp.ne.s32.totalorder %s70, %s72
      %p79 = scmp.eq.s32.totalorder %s29, 3
      %p80 = por %p78, %p79
      %p81 = scmp.ne.s32.totalorder %s72, %s73
      %p82 = scmp.eq.s32.totalorder %s29, 0
      %p83 = por %p81, %p82
      %p84 = scmp.ne.s32.totalorder %s72, %s73
      %p85 = scmp.eq.s32.totalorder %s30, 3
      %p86 = por %p84, %p85
      %p88 = scmp.ne.s32.totalorder %s73, %s87
      %p89 = scmp.eq.s32.totalorder %s30, 0
      %p90 = por %p88, %p89
      %s91 = ssub.s32 %s32, %s39
      %p92 = scmp.eq.s32.totalorder %s91, 0
      %s94 = sadd.s32 %s93, 1
      %s95 = scalar_select %p92, %s93, %s94
      %p98 = pneg %p92
      %p99 = scmp.eq.s32.totalorder %s24, 3
      %p100 = por %p98, %p99
      %p101 = scmp.ne.s32.totalorder %s93, %s96
      %p102 = scmp.eq.s32.totalorder %s24, 0
      %p103 = por %p101, %p102
      %p104 = scmp.ne.s32.totalorder %s93, %s96
      %p105 = scmp.eq.s32.totalorder %s29, 3
      %p106 = por %p104, %p105
      %p107 = scmp.ne.s32.totalorder %s96, %s97
      %p108 = scmp.eq.s32.totalorder %s29, 0
      %p109 = por %p107, %p108
      %p110 = scmp.ne.s32.totalorder %s96, %s97
      %p111 = scmp.eq.s32.totalorder %s30, 3
      %p112 = por %p110, %p111
      %p114 = scmp.ne.s32.totalorder %s97, %s113
      %p115 = scmp.eq.s32.totalorder %s30, 0
      %p116 = por %p114, %p115
      %s118 = sadd.s32 %s117, 1
      %p121 = scmp.eq.s32.totalorder %s24, 3
      %p122 = scmp.ne.s32.totalorder %s117, %s119
      %p123 = scmp.eq.s32.totalorder %s24, 0
      %p124 = por %p122, %p123
      %p125 = scmp.ne.s32.totalorder %s117, %s119
      %p126 = scmp.eq.s32.totalorder %s29, 3
      %p127 = por %p125, %p126
      %p128 = scmp.ne.s32.totalorder %s119, %s120
      %p129 = scmp.eq.s32.totalorder %s29, 0
      %p130 = por %p128, %p129
      %p131 = scmp.ne.s32.totalorder %s119, %s120
      %p132 = scmp.eq.s32.totalorder %s30, 3
      %p133 = por %p131, %p132
      %p135 = scmp.ne.s32.totalorder %s120, %s134
      %p136 = scmp.eq.s32.totalorder %s30, 0
      %p137 = por %p135, %p136
      %s139 = sadd.s32 %s138, 1
      %p142 = scmp.eq.s32.totalorder %s24, 3
      %p143 = scmp.ne.s32.totalorder %s138, %s140
      %p144 = scmp.eq.s32.totalorder %s24, 0
      %p145 = por %p143, %p144
      %p146 = scmp.ne.s32.totalorder %s138, %s140
      %p147 = scmp.eq.s32.totalorder %s29, 3
      %p148 = por %p146, %p147
      %p149 = scmp.ne.s32.totalorder %s140, %s141
      %p150 = scmp.eq.s32.totalorder %s29, 0
      %p151 = por %p149, %p150
      %p152 = scmp.ne.s32.totalorder %s140, %s141
      %p153 = scmp.eq.s32.totalorder %s30, 3
      %p154 = por %p152, %p153
      %p156 = scmp.ne.s32.totalorder %s141, %s155
      %p157 = scmp.eq.s32.totalorder %s30, 0
      %p158 = por %p156, %p157
      %s160 = sadd.s32 %s159, 1
      %p163 = scmp.eq.s32.totalorder %s24, 3
      %p164 = scmp.ne.s32.totalorder %s159, %s161
      %p165 = scmp.eq.s32.totalorder %s24, 0
      %p166 = por %p164, %p165
      %p167 = scmp.ne.s32.totalorder %s159, %s161
      %p168 = scmp.eq.s32.totalorder %s29, 3
      %p169 = por %p167, %p168
      %p170 = scmp.ne.s32.totalorder %s161, %s162
      %p171 = scmp.eq.s32.totalorder %s29, 0
      %p172 = por %p170, %p171
      %p173 = scmp.ne.s32.totalorder %s161, %s162
      %p174 = scmp.eq.s32.totalorder %s30, 3
      %p175 = por %p173, %p174
      %p177 = scmp.ne.s32.totalorder %s162, %s176
      %p178 = scmp.eq.s32.totalorder %s30, 0
      %p179 = por %p177, %p178
      %s181 = sadd.s32 %s180, 1
      %p184 = scmp.eq.s32.totalorder %s24, 3
      %p185 = scmp.ne.s32.totalorder %s180, %s182
      %p186 = scmp.eq.s32.totalorder %s24, 0
      %p187 = por %p185, %p186
      %p188 = scmp.ne.s32.totalorder %s180, %s182
      %p189 = scmp.eq.s32.totalorder %s29, 3
      %p190 = por %p188, %p189
      %p191 = scmp.ne.s32.totalorder %s182, %s183
      %p192 = scmp.eq.s32.totalorder %s29, 0
      %p193 = por %p191, %p192
      %p194 = scmp.ne.s32.totalorder %s182, %s183
      %p195 = scmp.eq.s32.totalorder %s30, 3
      %p196 = por %p194, %p195
      %p198 = scmp.ne.s32.totalorder %s183, %s197
      %p199 = scmp.eq.s32.totalorder %s30, 0
      %p200 = por %p198, %p199
      %s202 = sadd.s32 %s201, 1
      %p205 = scmp.eq.s32.totalorder %s24, 3
      %p206 = scmp.ne.s32.totalorder %s201, %s203
      %p207 = scmp.eq.s32.totalorder %s24, 0
      %p208 = por %p206, %p207
      %p209 = scmp.ne.s32.totalorder %s201, %s203
      %p210 = scmp.eq.s32.totalorder %s29, 3
      %p211 = por %p209, %p210
      %p212 = scmp.ne.s32.totalorder %s203, %s204
      %p213 = scmp.eq.s32.totalorder %s29, 0
      %p214 = por %p212, %p213
      %p215 = scmp.ne.s32.totalorder %s203, %s204
      %p216 = scmp.eq.s32.totalorder %s30, 3
      %p217 = por %p215, %p216
      %p219 = scmp.ne.s32.totalorder %s204, %s218
      %p220 = scmp.eq.s32.totalorder %s30, 0
      %p221 = por %p219, %p220
      %s223 = sadd.s32 %s222, 1
      %p226 = scmp.eq.s32.totalorder %s24, 3
      %p227 = scmp.ne.s32.totalorder %s222, %s224
      %p228 = scmp.eq.s32.totalorder %s24, 0
      %p229 = por %p227, %p228
      %p230 = scmp.ne.s32.totalorder %s222, %s224
      %p231 = scmp.eq.s32.totalorder %s29, 3
      %p232 = por %p230, %p231
      %p233 = scmp.ne.s32.totalorder %s224, %s225
      %p234 = scmp.eq.s32.totalorder %s29, 0
      %p235 = por %p233, %p234
      %p236 = scmp.ne.s32.totalorder %s224, %s225
      %p237 = scmp.eq.s32.totalorder %s30, 3
      %p238 = por %p236, %p237
      %p240 = scmp.ne.s32.totalorder %s225, %s239
      %p241 = scmp.eq.s32.totalorder %s30, 0
      %p242 = por %p240, %p241
      %s244 = sadd.s32 %s243, 1
      %p247 = scmp.eq.s32.totalorder %s24, 3
      %p248 = scmp.ne.s32.totalorder %s243, %s245
      %p249 = scmp.eq.s32.totalorder %s24, 0
      %p250 = por %p248, %p249
      %p251 = scmp.ne.s32.totalorder %s243, %s245
      %p252 = scmp.eq.s32.totalorder %s29, 3
      %p253 = por %p251, %p252
      %p254 = scmp.ne.s32.totalorder %s245, %s246
      %p255 = scmp.eq.s32.totalorder %s29, 0
      %p256 = por %p254, %p255
      %p257 = scmp.ne.s32.totalorder %s245, %s246
      %p258 = scmp.eq.s32.totalorder %s30, 3
      %p259 = por %p257, %p258
      %p261 = scmp.ne.s32.totalorder %s246, %s260
      %p262 = scmp.eq.s32.totalorder %s30, 0
      %p263 = por %p261, %p262
      %s265 = sadd.s32 %s264, 1
      %p268 = scmp.eq.s32.totalorder %s24, 3
      %p269 = scmp.ne.s32.totalorder %s264, %s266
      %p270 = scmp.eq.s32.totalorder %s24, 0
      %p271 = por %p269, %p270
      %p272 = scmp.ne.s32.totalorder %s264, %s266
      %p273 = scmp.eq.s32.totalorder %s29, 3
      %p274 = por %p272, %p273
      %p275 = scmp.ne.s32.totalorder %s266, %s267
      %p276 = scmp.eq.s32.totalorder %s29, 0
      %p277 = por %p275, %p276
      %p278 = scmp.ne.s32.totalorder %s266, %s267
      %p279 = scmp.eq.s32.totalorder %s30, 3
      %p280 = por %p278, %p279
      %p282 = scmp.ne.s32.totalorder %s267, %s281
      %p283 = scmp.eq.s32.totalorder %s30, 0
      %p284 = por %p282, %p283
      %s286 = sadd.s32 %s285, 1
      %p289 = scmp.eq.s32.totalorder %s24, 3
      %p290 = scmp.ne.s32.totalorder %s285, %s287
      %p291 = scmp.eq.s32.totalorder %s24, 0
      %p292 = por %p290, %p291
      %p293 = scmp.ne.s32.totalorder %s285, %s287
      %p294 = scmp.eq.s32.totalorder %s29, 3
      %p295 = por %p293, %p294
      %p296 = scmp.ne.s32.totalorder %s287, %s288
      %p297 = scmp.eq.s32.totalorder %s29, 0
      %p298 = por %p296, %p297
      %p299 = scmp.ne.s32.totalorder %s287, %s288
      %p300 = scmp.eq.s32.totalorder %s30, 3
      %p301 = por %p299, %p300
      %p303 = scmp.ne.s32.totalorder %s288, %s302
      %p304 = scmp.eq.s32.totalorder %s30, 0
      %p305 = por %p303, %p304
      %s307 = sadd.s32 %s306, 1
      %p310 = scmp.eq.s32.totalorder %s24, 3
      %p311 = scmp.ne.s32.totalorder %s306, %s308
      %p312 = scmp.eq.s32.totalorder %s24, 0
      %p313 = por %p311, %p312
      %p314 = scmp.ne.s32.totalorder %s306, %s308
      %p315 = scmp.eq.s32.totalorder %s29, 3
      %p316 = por %p314, %p315
      %p317 = scmp.ne.s32.totalorder %s308, %s309
      %p318 = scmp.eq.s32.totalorder %s29, 0
      %p319 = por %p317, %p318
      %p320 = scmp.ne.s32.totalorder %s308, %s309
      %p321 = scmp.eq.s32.totalorder %s30, 3
      %p322 = por %p320, %p321
      %p324 = scmp.ne.s32.totalorder %s309, %s323
      %p325 = scmp.eq.s32.totalorder %s30, 0
      %p326 = por %p324, %p325
      %p327 = scmp.le.s32.totalorder 1, %s24
      %p328 = scmp.lt.s32.totalorder %s24, 5
      %p329 = pnand %p327, %p328
      %p330 = pneg %p329
      // Predicated region
      $region9: #{tpu_custom_call.1} parent=5 // pred_check
        _
      $region10: #{tpu_custom_call.1} parent=5 // pred_check_branch
        %332 = sbr.rel (%p329) target = $region12
      $region11: #{tpu_custom_call.1} parent=5 // pred_region
        %s333 = ssub.s32 %s24, 1
        // Predicated region
        $region13: #{tpu_custom_call.1} parent=11 // pred_check
          %p334 = pneg %p62
        $region14: #{tpu_custom_call.1} parent=11 // pred_check_branch
          %336 = sbr.rel (%p334) target = $region16
        $region15: #{tpu_custom_call.1} parent=11 // pred_region
          %s337 = smul.u32 4, %s34
          %p338 = scmp.lt.s32.totalorder %s337, 3
          %s339 = scalar_select %p338, %s337, 3
          %s340 = smul.addr %s339, 8
          %s341 = scalar_lea.vmem %s0, %s340
          %s342 = smul.u32 4, %s34
        $region16: #{tpu_custom_call.1} parent=11 // pred_fallthru
          _
        // Predicated region
        $region17: #{tpu_custom_call.1} parent=11 // pred_check
          %p343 = pneg %p83
        $region18: #{tpu_custom_call.1} parent=11 // pred_check_branch
          %345 = sbr.rel (%p343) target = $region20
        $region19: #{tpu_custom_call.1} parent=11 // pred_region
          _
        $region20: #{tpu_custom_call.1} parent=11 // pred_fallthru
          _
        // Predicated region
        $region21: #{tpu_custom_call.1} parent=11 // pred_check
          %p346 = pneg %p109
        $region22: #{tpu_custom_call.1} parent=11 // pred_check_branch
          %348 = sbr.rel (%p346) target = $region24
        $region23: #{tpu_custom_call.1} parent=11 // pred_region
          %s349 = smul.u32 4, %s34
          %p350 = scmp.lt.s32.totalorder %s349, 3
          %s351 = scalar_select %p350, %s349, 3
          %s352 = smul.addr %s351, 4
          %s353 = scalar_lea.vmem %s2, %s352
          %s354 = smul.u32 4, %s34
        $region24: #{tpu_custom_call.1} parent=11 // pred_fallthru
          _
        // Predicated region
        $region25: #{tpu_custom_call.1} parent=11 // pred_check
          %p355 = pneg %p130
        $region26: #{tpu_custom_call.1} parent=11 // pred_check_branch
          %357 = sbr.rel (%p355) target = $region28
        $region27: #{tpu_custom_call.1} parent=11 // pred_region
          %359 = vsyncadd [#allocation6], 0
          %s360 = sshll.u32 %s3, 4
          %s361 = int_to_ptr.hbm [resolvable:$true] %s360
          %s362 = sshll.u32 [#allocation5], 4
          %s363 = int_to_ptr.vmem [resolvable:$true] %s362
          %368 = dma.hbm_to_vmem [thread:$0]  %s361, 1024, %s363, [#allocation6], 64, 64, 4
        $region28: #{tpu_custom_call.1} parent=11 // pred_fallthru
          _
        // Predicated region
        $region29: #{tpu_custom_call.1} parent=11 // pred_check
          %p369 = pneg %p151
        $region30: #{tpu_custom_call.1} parent=11 // pred_check_branch
          %371 = sbr.rel (%p369) target = $region32
        $region31: #{tpu_custom_call.1} parent=11 // pred_region
          %373 = vsyncadd [#allocation9], 0
          %s374 = sshll.u32 %s4, 4
          %s375 = int_to_ptr.hbm [resolvable:$true] %s374
          %s376 = sshll.u32 [#allocation8], 4
          %s377 = int_to_ptr.vmem [resolvable:$true] %s376
          %382 = dma.hbm_to_vmem [thread:$0]  %s375, 1024, %s377, [#allocation9], 64, 64, 4
        $region32: #{tpu_custom_call.1} parent=11 // pred_fallthru
          _
        // Predicated region
        $region33: #{tpu_custom_call.1} parent=11 // pred_check
          %p383 = pneg %p172
        $region34: #{tpu_custom_call.1} parent=11 // pred_check_branch
          %385 = sbr.rel (%p383) target = $region36
        $region35: #{tpu_custom_call.1} parent=11 // pred_region
          _
        $region36: #{tpu_custom_call.1} parent=11 // pred_fallthru
          _
        // Predicated region
        $region37: #{tpu_custom_call.1} parent=11 // pred_check
          %p386 = pneg %p193
        $region38: #{tpu_custom_call.1} parent=11 // pred_check_branch
          %388 = sbr.rel (%p386) target = $region40
        $region39: #{tpu_custom_call.1} parent=11 // pred_region
          %390 = vsyncadd [#allocation9], 0
          %s391 = sshll.u32 %s6, 4
          %s392 = int_to_ptr.hbm [resolvable:$true] %s391
          %s393 = sshll.u32 [#allocation10], 4
          %s394 = int_to_ptr.vmem [resolvable:$true] %s393
          %399 = dma.hbm_to_vmem [thread:$0]  %s392, 1024, %s394, [#allocation9], 64, 64, 4
        $region40: #{tpu_custom_call.1} parent=11 // pred_fallthru
          _
        // Predicated region
        $region41: #{tpu_custom_call.1} parent=11 // pred_check
          %p400 = pneg %p214
        $region42: #{tpu_custom_call.1} parent=11 // pred_check_branch
          %402 = sbr.rel (%p400) target = $region44
        $region43: #{tpu_custom_call.1} parent=11 // pred_region
          %404 = vsyncadd [#allocation12], 0
          %s405 = sshll.u32 %s7, 4
          %s406 = int_to_ptr.hbm [resolvable:$true] %s405
          %s407 = sshll.u32 [#allocation11], 4
          %s408 = int_to_ptr.vmem [resolvable:$true] %s407
          %413 = dma.hbm_to_vmem [thread:$0]  %s406, 1024, %s408, [#allocation12], 64, 64, 4
        $region44: #{tpu_custom_call.1} parent=11 // pred_fallthru
          _
        // Predicated region
        $region45: #{tpu_custom_call.1} parent=11 // pred_check
          %p414 = pneg %p235
        $region46: #{tpu_custom_call.1} parent=11 // pred_check_branch
          %416 = sbr.rel (%p414) target = $region48
        $region47: #{tpu_custom_call.1} parent=11 // pred_region
          _
        $region48: #{tpu_custom_call.1} parent=11 // pred_fallthru
          _
        // Predicated region
        $region49: #{tpu_custom_call.1} parent=11 // pred_check
          %p417 = pneg %p256
        $region50: #{tpu_custom_call.1} parent=11 // pred_check_branch
          %419 = sbr.rel (%p417) target = $region52
        $region51: #{tpu_custom_call.1} parent=11 // pred_region
          %421 = vsyncadd [#allocation12], 0
          %s422 = sshll.u32 %s9, 4
          %s423 = int_to_ptr.hbm [resolvable:$true] %s422
          %s424 = sshll.u32 [#allocation13], 4
          %s425 = int_to_ptr.vmem [resolvable:$true] %s424
          %430 = dma.hbm_to_vmem [thread:$0]  %s423, 2048, %s425, [#allocation12], 128, 128, 8
        $region52: #{tpu_custom_call.1} parent=11 // pred_fallthru
          _
      $region12: #{tpu_custom_call.1} parent=5 // pred_fallthru
        _
      %p431 = scmp.lt.s32.totalorder %s24, 4
      // Predicated region
      $region53: #{tpu_custom_call.1} parent=5 // pred_check
        %p432 = pneg %p431
      $region54: #{tpu_custom_call.1} parent=5 // pred_check_branch
        %434 = sbr.rel (%p432) target = $region56
      $region55: #{tpu_custom_call.1} parent=5 // pred_region
        _
      $region56: #{tpu_custom_call.1} parent=5 // pred_fallthru
        _
      %p435 = scmp.le.s32.totalorder 1, %s24
      %p436 = scmp.lt.s32.totalorder %s24, 5
      %p437 = pnand %p435, %p436
      %p438 = pneg %p437
      // Predicated region
      $region57: #{tpu_custom_call.1} parent=5 // pred_check
        _
      $region58: #{tpu_custom_call.1} parent=5 // pred_check_branch
        %440 = sbr.rel (%p437) target = $region60
      $region59: #{tpu_custom_call.1} parent=5 // pred_region
        %s441 = ssub.s32 %s24, 1
        // Predicated region
        $region61: #{tpu_custom_call.1} parent=59 // pred_check
          %p442 = pneg %p130
        $region62: #{tpu_custom_call.1} parent=59 // pred_check_branch
          %444 = sbr.rel (%p442) target = $region64
        $region63: #{tpu_custom_call.1} parent=59 // pred_region
          %446 = dma.done [#allocation6], 1024
        $region64: #{tpu_custom_call.1} parent=59 // pred_fallthru
          _
        // Predicated region
        $region65: #{tpu_custom_call.1} parent=59 // pred_check
          %p447 = pneg %p151
        $region66: #{tpu_custom_call.1} parent=59 // pred_check_branch
          %449 = sbr.rel (%p447) target = $region68
        $region67: #{tpu_custom_call.1} parent=59 // pred_region
          %451 = dma.done [#allocation9], 1024
        $region68: #{tpu_custom_call.1} parent=59 // pred_fallthru
          _
        // Predicated region
        $region69: #{tpu_custom_call.1} parent=59 // pred_check
          %p452 = pneg %p193
        $region70: #{tpu_custom_call.1} parent=59 // pred_check_branch
          %454 = sbr.rel (%p452) target = $region72
        $region71: #{tpu_custom_call.1} parent=59 // pred_region
          %456 = dma.done [#allocation9], 1024
        $region72: #{tpu_custom_call.1} parent=59 // pred_fallthru
          _
        // Predicated region
        $region73: #{tpu_custom_call.1} parent=59 // pred_check
          %p457 = pneg %p214
        $region74: #{tpu_custom_call.1} parent=59 // pred_check_branch
          %459 = sbr.rel (%p457) target = $region76
        $region75: #{tpu_custom_call.1} parent=59 // pred_region
          %461 = dma.done [#allocation12], 1024
        $region76: #{tpu_custom_call.1} parent=59 // pred_fallthru
          _
        // Predicated region
        $region77: #{tpu_custom_call.1} parent=59 // pred_check
          %p462 = pneg %p256
        $region78: #{tpu_custom_call.1} parent=59 // pred_check_branch
          %464 = sbr.rel (%p462) target = $region80
        $region79: #{tpu_custom_call.1} parent=59 // pred_region
          %466 = dma.done [#allocation12], 2048
        $region80: #{tpu_custom_call.1} parent=59 // pred_fallthru
          _
        %s467 = smul.u32 4, %s34
        %p468 = scmp.lt.s32.totalorder %s467, 3
        %s469 = scalar_select %p468, %s467, 3
        %s470 = smul.addr %s469, 8
        %s471 = scalar_lea.vmem %s0, %s470
        %p472 = pneg %p62
        %p473 = pneg %p59
        %p474 = pneg %p83
        %p475 = pneg %p80
        %s476 = smul.u32 4, %s34
        %p477 = scmp.lt.s32.totalorder %s476, 3
        %s478 = scalar_select %p477, %s476, 3
        %s479 = smul.addr %s478, 4
        %s480 = scalar_lea.vmem %s2, %s479
        %p481 = pneg %p109
        %p482 = pneg %p106
        %p483 = pneg %p130
        %p484 = pneg %p127
        %p485 = pneg %p151
        %p486 = pneg %p148
        %p487 = pneg %p172
        %p488 = pneg %p169
        %p489 = pneg %p193
        %p490 = pneg %p190
        %p491 = pneg %p214
        %p492 = pneg %p211
        %p493 = pneg %p235
        %p494 = pneg %p232
        %p495 = pneg %p256
        %p496 = pneg %p253
        %p497 = pneg %p277
        %p498 = pneg %p274
        %p499 = pneg %p298
        %p500 = pneg %p295
        %p501 = pneg %p319
        %p502 = pneg %p316
        %s503 = smul.u32 4, %s34
        %p504 = scmp.lt.s32.totalorder %s503, 3
        %s505 = scalar_select %p504, %s503, 3
        %s506 = smul.addr %s505, 8
        %s507 = scalar_lea.vmem %s0, %s506
        %s508 = smul.u32 4, %s34
        %s509 = smul.u32 4, %s34
        %p510 = scmp.lt.s32.totalorder %s509, 3
        %s511 = scalar_select %p510, %s509, 3
        %s512 = smul.addr %s511, 4
        %s513 = scalar_lea.vmem %s2, %s512
        %s514 = smul.u32 4, %s34
        %s516 = smul.u32 %s34, 32
        %v517 = vld [vmem:[%s507] sm:$0xff]
        %v518 = vld [vmem:[%s507 + $0x8] sm:$0xff]
        %v519 = vld [vmem:[%s507 + $0x10] sm:$0xff]
        %v520 = vld [vmem:[%s507 + $0x18] sm:$0xff]
        %v521 = vld [vmem:[%s513] sm:$0xf]
        %v522 = vld [vmem:[%s513 + $0x4] sm:$0xf]
        %v523 = vld [vmem:[%s513 + $0x8] sm:$0xf]
        %v524 = vld [vmem:[%s513 + $0xc] sm:$0xf]
        %p525 = scmp.eq.s32.totalorder %s33, 0
        // Predicated region
        $region81: #{tpu_custom_call.1} parent=59 // pred_check
          %p526 = pneg %p525
        $region82: #{tpu_custom_call.1} parent=59 // pred_check_branch
          %528 = sbr.rel (%p526) target = $region84
        $region83: #{tpu_custom_call.1} parent=59 // pred_region
          %v529 = vld [vmem:[%s1] sm:$0xf]
          %v530 = vld [vmem:[%s1 + $0x4] sm:$0xf]
          %v531 = vld [vmem:[%s1 + $0x8] sm:$0xf]
          %v532 = vld [vmem:[%s1 + $0xc] sm:$0xf]
          %v537 = vunpack.c.l.b16 %v521
          %v538 = vunpack.c.l.b16 %v522
          %v539 = vunpack.c.l.b16 %v523
          %v540 = vunpack.c.l.b16 %v524
          %v541 = vpack.c.b16 %v538, %v537
          %v542 = vpack.c.b16 %v540, %v539
          %v547 = vunpack.c.l.b16 %v529
          %v548 = vunpack.c.l.b16 %v530
          %v549 = vunpack.c.l.b16 %v531
          %v550 = vunpack.c.l.b16 %v532
          %v551 = vpack.c.b16 %v548, %v547
          %v552 = vpack.c.b16 %v550, %v549
          %vm555 = vcmask 261120
          %v557 = vsel %vm555, %v541, 0
          %v560 = vsel %vm555, %v542, 0
          %562 = vmatpush.bf16.msra.mxu0 0
          %563 = vmatpush.bf16.msra.mxu0 0
          %564 = vmatpush.bf16.msra.mxu0 0
          %565 = vmatpush.bf16.msra.mxu0 0
          %566 = vmatpush.bf16.msra.mxu0 0
          %567 = vmatpush.bf16.msra.mxu0 0
          %568 = vmatpush.bf16.msra.mxu0 %v552
          %569 = vmatpush.bf16.msra.mxu0 %v551
          %570 = vmatmul.bf16.gmra.mxu0 %v557
          %v571 = vpop.f32.mrf.mxu0
          %v572 = vadd.f32 0.0, %v571
          %v573 = vpop.f32.mrf.mxu0
          %v574 = vadd.f32 0.0, %v573
          %575 = vmatmul.bf16.gmra.mxu0 %v560
          %v576 = vpop.f32.mrf.mxu0
          %v577 = vadd.f32 0.0, %v576
          %v578 = vpop.f32.mrf.mxu0
          %v579 = vadd.f32 0.0, %v578
          %580 = vdwg.mxu0
          %582 = vset.pattern.permute.xlu0 0
          %583 = vperm.xlu0 %582, %v517
          %v584 = vpop.permute.xlu0 %583
          %587 = vset.pattern.permute.xlu0 0
          %588 = vperm.xlu0 %587, %v518
          %v589 = vpop.permute.xlu0 %588
          %592 = vset.pattern.permute.xlu0 0
          %593 = vperm.xlu0 %592, %v519
          %v594 = vpop.permute.xlu0 %593
          %597 = vset.pattern.permute.xlu0 0
          %598 = vperm.xlu0 %597, %v520
          %v599 = vpop.permute.xlu0 %598
          %v601 = vmul.f32 %v584, %v572
          %v602 = vmul.f32 %v589, %v574
          %v603 = vmul.f32 %v594, %v577
          %v604 = vmul.f32 %v599, %v579
          %v605 = vpack.c.bf16 %v601, %v601
          %v606 = vpack.c.bf16 %v602, %v602
          %v607 = vpack.c.bf16 %v603, %v603
          %v608 = vpack.c.bf16 %v604, %v604
          %s609 = sshra.s32 %s516, 3
          %s610 = sand.u32 %s516, 7
          %s611 = smul.addr %s609, 4
          %s612 = scalar_lea.vmem [#allocation2], %s611
          %613 = vst [vmem:[%s612] sm:$0xf] %v605
          %614 = vst [vmem:[%s612 + $0x4] sm:$0xf] %v606
          %615 = vst [vmem:[%s612 + $0x8] sm:$0xf] %v607
          %616 = vst [vmem:[%s612 + $0xc] sm:$0xf] %v608
        $region84: #{tpu_custom_call.1} parent=59 // pred_fallthru
          _
        %p617 = scmp.eq.s32.totalorder %s33, 1
        // Predicated region
        $region85: #{tpu_custom_call.1} parent=59 // pred_check
          %p618 = pneg %p617
        $region86: #{tpu_custom_call.1} parent=59 // pred_check_branch
          %620 = sbr.rel (%p618) target = $region88
        $region87: #{tpu_custom_call.1} parent=59 // pred_region
          %v621 = vld [vmem:[#allocation2] sm:$0xf]
          %v622 = vld [vmem:[#allocation2 + $0x4] sm:$0xf]
          %v623 = vld [vmem:[#allocation2 + $0x8] sm:$0xf]
          %v624 = vld [vmem:[#allocation2 + $0xc] sm:$0xf]
          %v629 = vunpack.c.l.b16 %v521
          %v630 = vunpack.c.l.b16 %v522
          %v631 = vunpack.c.l.b16 %v523
          %v632 = vunpack.c.l.b16 %v524
          %v633 = vpack.c.b16 %v630, %v629
          %v634 = vpack.c.b16 %v632, %v631
          %v639 = vunpack.c.l.b16 %v621
          %v640 = vunpack.c.l.b16 %v622
          %v641 = vunpack.c.l.b16 %v623
          %v642 = vunpack.c.l.b16 %v624
          %v643 = vpack.c.b16 %v640, %v639
          %v644 = vpack.c.b16 %v642, %v641
          %vm647 = vcmask 261120
          %v649 = vsel %vm647, %v633, 0
          %v652 = vsel %vm647, %v634, 0
          %654 = vmatpush.bf16.msra.mxu0 0
          %655 = vmatpush.bf16.msra.mxu0 0
          %656 = vmatpush.bf16.msra.mxu0 0
          %657 = vmatpush.bf16.msra.mxu0 0
          %658 = vmatpush.bf16.msra.mxu0 0
          %659 = vmatpush.bf16.msra.mxu0 0
          %660 = vmatpush.bf16.msra.mxu0 %v644
          %661 = vmatpush.bf16.msra.mxu0 %v643
          %662 = vmatmul.bf16.gmra.mxu0 %v649
          %v663 = vpop.f32.mrf.mxu0
          %v664 = vadd.f32 0.0, %v663
          %v665 = vpop.f32.mrf.mxu0
          %v666 = vadd.f32 0.0, %v665
          %667 = vmatmul.bf16.gmra.mxu0 %v652
          %v668 = vpop.f32.mrf.mxu0
          %v669 = vadd.f32 0.0, %v668
          %v670 = vpop.f32.mrf.mxu0
          %v671 = vadd.f32 0.0, %v670
          %672 = vdwg.mxu0
          %674 = vset.pattern.permute.xlu0 1
          %675 = vperm.xlu0 %674, %v517
          %v676 = vpop.permute.xlu0 %675
          %679 = vset.pattern.permute.xlu0 1
          %680 = vperm.xlu0 %679, %v518
          %v681 = vpop.permute.xlu0 %680
          %684 = vset.pattern.permute.xlu0 1
          %685 = vperm.xlu0 %684, %v519
          %v686 = vpop.permute.xlu0 %685
          %689 = vset.pattern.permute.xlu0 1
          %690 = vperm.xlu0 %689, %v520
          %v691 = vpop.permute.xlu0 %690
          %v693 = vmul.f32 %v676, %v664
          %v694 = vmul.f32 %v681, %v666
          %v695 = vmul.f32 %v686, %v669
          %v696 = vmul.f32 %v691, %v671
          %v697 = vpack.c.bf16 %v694, %v693
          %v698 = vpack.c.bf16 %v696, %v695
          %v699 = vld [vmem:[#allocation5] sm:$0xf]
          %v700 = vld [vmem:[#allocation5 + $0x4] sm:$0xf]
          %v701 = vld [vmem:[#allocation5 + $0x8] sm:$0xf]
          %v702 = vld [vmem:[#allocation5 + $0xc] sm:$0xf]
          %v703 = vld [vmem:[#allocation5 + $0x10] sm:$0xf]
          %v704 = vld [vmem:[#allocation5 + $0x14] sm:$0xf]
          %v705 = vld [vmem:[#allocation5 + $0x18] sm:$0xf]
          %v706 = vld [vmem:[#allocation5 + $0x1c] sm:$0xf]
          %v707 = vld [vmem:[#allocation5 + $0x20] sm:$0xf]
          %v708 = vld [vmem:[#allocation5 + $0x24] sm:$0xf]
          %v709 = vld [vmem:[#allocation5 + $0x28] sm:$0xf]
          %v710 = vld [vmem:[#allocation5 + $0x2c] sm:$0xf]
          %v711 = vld [vmem:[#allocation5 + $0x30] sm:$0xf]
          %v712 = vld [vmem:[#allocation5 + $0x34] sm:$0xf]
          %v713 = vld [vmem:[#allocation5 + $0x38] sm:$0xf]
          %v714 = vld [vmem:[#allocation5 + $0x3c] sm:$0xf]
          %s715 = sshra.s32 %s516, 3
          %s716 = sand.u32 %s516, 7
          %s717 = smul.addr %s715, 4
          %s718 = scalar_lea.vmem [#allocation2], %s717
          %v719 = vld [vmem:[%s718] sm:$0xf]
          %v720 = vld [vmem:[%s718 + $0x4] sm:$0xf]
          %v721 = vld [vmem:[%s718 + $0x8] sm:$0xf]
          %v722 = vld [vmem:[%s718 + $0xc] sm:$0xf]
          %v723 = vld [vmem:[#allocation8] sm:$0xf]
          %v724 = vld [vmem:[#allocation8 + $0x4] sm:$0xf]
          %v725 = vld [vmem:[#allocation8 + $0x8] sm:$0xf]
          %v726 = vld [vmem:[#allocation8 + $0xc] sm:$0xf]
          %v727 = vld [vmem:[#allocation8 + $0x10] sm:$0xf]
          %v728 = vld [vmem:[#allocation8 + $0x14] sm:$0xf]
          %v729 = vld [vmem:[#allocation8 + $0x18] sm:$0xf]
          %v730 = vld [vmem:[#allocation8 + $0x1c] sm:$0xf]
          %v731 = vld [vmem:[#allocation8 + $0x20] sm:$0xf]
          %v732 = vld [vmem:[#allocation8 + $0x24] sm:$0xf]
          %v733 = vld [vmem:[#allocation8 + $0x28] sm:$0xf]
          %v734 = vld [vmem:[#allocation8 + $0x2c] sm:$0xf]
          %v735 = vld [vmem:[#allocation8 + $0x30] sm:$0xf]
          %v736 = vld [vmem:[#allocation8 + $0x34] sm:$0xf]
          %v737 = vld [vmem:[#allocation8 + $0x38] sm:$0xf]
          %v738 = vld [vmem:[#allocation8 + $0x3c] sm:$0xf]
          %v743 = vunpack.c.l.b16 %v719
          %v744 = vunpack.c.l.b16 %v720
          %v745 = vunpack.c.l.b16 %v721
          %v746 = vunpack.c.l.b16 %v722
          %v747 = vpack.c.b16 %v744, %v743
          %v748 = vpack.c.b16 %v746, %v745
          %v767 = vunpack.c.l.b16 %v723
          %v768 = vunpack.c.l.b16 %v724
          %v769 = vunpack.c.l.b16 %v725
          %v770 = vunpack.c.l.b16 %v726
          %v771 = vunpack.c.l.b16 %v727
          %v772 = vunpack.c.l.b16 %v728
          %v773 = vunpack.c.l.b16 %v729
          %v774 = vunpack.c.l.b16 %v730
          %v775 = vunpack.c.l.b16 %v731
          %v776 = vunpack.c.l.b16 %v732
          %v777 = vunpack.c.l.b16 %v733
          %v778 = vunpack.c.l.b16 %v734
          %v779 = vunpack.c.l.b16 %v735
          %v780 = vunpack.c.l.b16 %v736
          %v781 = vunpack.c.l.b16 %v737
          %v782 = vunpack.c.l.b16 %v738
          %v783 = vpack.c.b16 %v768, %v767
          %v784 = vpack.c.b16 %v770, %v769
          %v785 = vpack.c.b16 %v772, %v771
          %v786 = vpack.c.b16 %v774, %v773
          %v787 = vpack.c.b16 %v776, %v775
          %v788 = vpack.c.b16 %v778, %v777
          %v789 = vpack.c.b16 %v780, %v779
          %v790 = vpack.c.b16 %v782, %v781
          %799 = vmatpush.bf16.msra.mxu0 %v790
          %800 = vmatpush.bf16.msra.mxu0 %v789
          %801 = vmatpush.bf16.msra.mxu0 %v788
          %802 = vmatpush.bf16.msra.mxu0 %v787
          %803 = vmatpush.bf16.msra.mxu0 %v786
          %804 = vmatpush.bf16.msra.mxu0 %v785
          %805 = vmatpush.bf16.msra.mxu0 %v784
          %806 = vmatpush.bf16.msra.mxu0 %v783
          %807 = vmatmul.bf16.gmra.mxu0 %v747
          %v808 = vpop.f32.mrf.mxu0
          %v809 = vadd.f32 0.0, %v808
          %v810 = vpop.f32.mrf.mxu0
          %v811 = vadd.f32 0.0, %v810
          %812 = vmatmul.bf16.gmra.mxu0 %v748
          %v813 = vpop.f32.mrf.mxu0
          %v814 = vadd.f32 0.0, %v813
          %v815 = vpop.f32.mrf.mxu0
          %v816 = vadd.f32 0.0, %v815
          %817 = vdwg.mxu0
          %v834 = vunpack.c.l.b16 %v699
          %v835 = vunpack.c.l.b16 %v700
          %v836 = vunpack.c.l.b16 %v701
          %v837 = vunpack.c.l.b16 %v702
          %v838 = vunpack.c.l.b16 %v703
          %v839 = vunpack.c.l.b16 %v704
          %v840 = vunpack.c.l.b16 %v705
          %v841 = vunpack.c.l.b16 %v706
          %v842 = vunpack.c.l.b16 %v707
          %v843 = vunpack.c.l.b16 %v708
          %v844 = vunpack.c.l.b16 %v709
          %v845 = vunpack.c.l.b16 %v710
          %v846 = vunpack.c.l.b16 %v711
          %v847 = vunpack.c.l.b16 %v712
          %v848 = vunpack.c.l.b16 %v713
          %v849 = vunpack.c.l.b16 %v714
          %v850 = vpack.c.b16 %v835, %v834
          %v851 = vpack.c.b16 %v837, %v836
          %v852 = vpack.c.b16 %v839, %v838
          %v853 = vpack.c.b16 %v841, %v840
          %v854 = vpack.c.b16 %v843, %v842
          %v855 = vpack.c.b16 %v845, %v844
          %v856 = vpack.c.b16 %v847, %v846
          %v857 = vpack.c.b16 %v849, %v848
          %866 = vmatpush.bf16.msra.mxu0 %v857
          %867 = vmatpush.bf16.msra.mxu0 %v856
          %868 = vmatpush.bf16.msra.mxu0 %v855
          %869 = vmatpush.bf16.msra.mxu0 %v854
          %870 = vmatpush.bf16.msra.mxu0 %v853
          %871 = vmatpush.bf16.msra.mxu0 %v852
          %872 = vmatpush.bf16.msra.mxu0 %v851
          %873 = vmatpush.bf16.msra.mxu0 %v850
          %874 = vmatmul.bf16.gmra.mxu0 %v697
          %v875 = vpop.f32.mrf.mxu0
          %v876 = vadd.f32 %v809, %v875
          %v877 = vpop.f32.mrf.mxu0
          %v878 = vadd.f32 %v811, %v877
          %879 = vmatmul.bf16.gmra.mxu0 %v698
          %v880 = vpop.f32.mrf.mxu0
          %v881 = vadd.f32 %v814, %v880
          %v882 = vpop.f32.mrf.mxu0
          %v883 = vadd.f32 %v816, %v882
          %884 = vdwg.mxu0
          %v885 = vld [vmem:[%s5] sm:$0x1]
          %v887 = vperm.slane %v885, 0
          %v889 = vadd.f32 %v876, %v887
          %v890 = vadd.f32 %v878, %v887
          %v891 = vadd.f32 %v881, %v887
          %v892 = vadd.f32 %v883, %v887
          %vm893 = vcmp.gt.f32.partialorder %v889, 0.0
          %vm894 = vcmp.gt.f32.partialorder %v890, 0.0
          %vm895 = vcmp.gt.f32.partialorder %v891, 0.0
          %vm896 = vcmp.gt.f32.partialorder %v892, 0.0
          %v897 = vmul.f32 %v889, 1.442695
          %v898 = vpow.pop %v897
          %v899 = vmul.f32 %v890, 1.442695
          %v900 = vpow.pop %v899
          %v901 = vmul.f32 %v891, 1.442695
          %v902 = vpow.pop %v901
          %v903 = vmul.f32 %v892, 1.442695
          %v904 = vpow.pop %v903
          %v905 = vsub.f32 %v898, 1.0
          %v906 = vsub.f32 %v900, 1.0
          %v907 = vsub.f32 %v902, 1.0
          %v908 = vsub.f32 %v904, 1.0
          %v909 = vmul.f32 %v905, 1.6732632
          %v910 = vmul.f32 %v906, 1.6732632
          %v911 = vmul.f32 %v907, 1.6732632
          %v912 = vmul.f32 %v908, 1.6732632
          %v913 = vsel %vm893, %v889, %v909
          %v914 = vsel %vm894, %v890, %v910
          %v915 = vsel %vm895, %v891, %v911
          %v916 = vsel %vm896, %v892, %v912
          %v917 = vmul.f32 %v913, 1.050701
          %v918 = vmul.f32 %v914, 1.050701
          %v919 = vmul.f32 %v915, 1.050701
          %v920 = vmul.f32 %v916, 1.050701
          %v921 = vpack.c.bf16 %v917, %v917
          %v922 = vpack.c.bf16 %v918, %v918
          %v923 = vpack.c.bf16 %v919, %v919
          %v924 = vpack.c.bf16 %v920, %v920
          %s925 = smul.addr %s715, 4
          %s926 = scalar_lea.vmem [#allocation3], %s925
          %927 = vst [vmem:[%s926] sm:$0xf] %v921
          %928 = vst [vmem:[%s926 + $0x4] sm:$0xf] %v922
          %929 = vst [vmem:[%s926 + $0x8] sm:$0xf] %v923
          %930 = vst [vmem:[%s926 + $0xc] sm:$0xf] %v924
        $region88: #{tpu_custom_call.1} parent=59 // pred_fallthru
          _
        %p931 = scmp.eq.s32.totalorder %s33, 2
        // Predicated region
        $region89: #{tpu_custom_call.1} parent=59 // pred_check
          %p932 = pneg %p931
        $region90: #{tpu_custom_call.1} parent=59 // pred_check_branch
          %934 = sbr.rel (%p932) target = $region92
        $region91: #{tpu_custom_call.1} parent=59 // pred_region
          %v935 = vld [vmem:[#allocation3] sm:$0xf]
          %v936 = vld [vmem:[#allocation3 + $0x4] sm:$0xf]
          %v937 = vld [vmem:[#allocation3 + $0x8] sm:$0xf]
          %v938 = vld [vmem:[#allocation3 + $0xc] sm:$0xf]
          %v943 = vunpack.c.l.b16 %v521
          %v944 = vunpack.c.l.b16 %v522
          %v945 = vunpack.c.l.b16 %v523
          %v946 = vunpack.c.l.b16 %v524
          %v947 = vpack.c.b16 %v944, %v943
          %v948 = vpack.c.b16 %v946, %v945
          %v953 = vunpack.c.l.b16 %v935
          %v954 = vunpack.c.l.b16 %v936
          %v955 = vunpack.c.l.b16 %v937
          %v956 = vunpack.c.l.b16 %v938
          %v957 = vpack.c.b16 %v954, %v953
          %v958 = vpack.c.b16 %v956, %v955
          %vm961 = vcmask 261120
          %v963 = vsel %vm961, %v947, 0
          %v966 = vsel %vm961, %v948, 0
          %968 = vmatpush.bf16.msra.mxu0 0
          %969 = vmatpush.bf16.msra.mxu0 0
          %970 = vmatpush.bf16.msra.mxu0 0
          %971 = vmatpush.bf16.msra.mxu0 0
          %972 = vmatpush.bf16.msra.mxu0 0
          %973 = vmatpush.bf16.msra.mxu0 0
          %974 = vmatpush.bf16.msra.mxu0 %v958
          %975 = vmatpush.bf16.msra.mxu0 %v957
          %976 = vmatmul.bf16.gmra.mxu0 %v963
          %v977 = vpop.f32.mrf.mxu0
          %v978 = vadd.f32 0.0, %v977
          %v979 = vpop.f32.mrf.mxu0
          %v980 = vadd.f32 0.0, %v979
          %981 = vmatmul.bf16.gmra.mxu0 %v966
          %v982 = vpop.f32.mrf.mxu0
          %v983 = vadd.f32 0.0, %v982
          %v984 = vpop.f32.mrf.mxu0
          %v985 = vadd.f32 0.0, %v984
          %986 = vdwg.mxu0
          %988 = vset.pattern.permute.xlu0 1
          %989 = vperm.xlu0 %988, %v517
          %v990 = vpop.permute.xlu0 %989
          %993 = vset.pattern.permute.xlu0 1
          %994 = vperm.xlu0 %993, %v518
          %v995 = vpop.permute.xlu0 %994
          %998 = vset.pattern.permute.xlu0 1
          %999 = vperm.xlu0 %998, %v519
          %v1000 = vpop.permute.xlu0 %999
          %1003 = vset.pattern.permute.xlu0 1
          %1004 = vperm.xlu0 %1003, %v520
          %v1005 = vpop.permute.xlu0 %1004
          %v1007 = vmul.f32 %v990, %v978
          %v1008 = vmul.f32 %v995, %v980
          %v1009 = vmul.f32 %v1000, %v983
          %v1010 = vmul.f32 %v1005, %v985
          %v1011 = vpack.c.bf16 %v1008, %v1007
          %v1012 = vpack.c.bf16 %v1010, %v1009
          %v1013 = vld [vmem:[#allocation10] sm:$0xf]
          %v1014 = vld [vmem:[#allocation10 + $0x4] sm:$0xf]
          %v1015 = vld [vmem:[#allocation10 + $0x8] sm:$0xf]
          %v1016 = vld [vmem:[#allocation10 + $0xc] sm:$0xf]
          %v1017 = vld [vmem:[#allocation10 + $0x10] sm:$0xf]
          %v1018 = vld [vmem:[#allocation10 + $0x14] sm:$0xf]
          %v1019 = vld [vmem:[#allocation10 + $0x18] sm:$0xf]
          %v1020 = vld [vmem:[#allocation10 + $0x1c] sm:$0xf]
          %v1021 = vld [vmem:[#allocation10 + $0x20] sm:$0xf]
          %v1022 = vld [vmem:[#allocation10 + $0x24] sm:$0xf]
          %v1023 = vld [vmem:[#allocation10 + $0x28] sm:$0xf]
          %v1024 = vld [vmem:[#allocation10 + $0x2c] sm:$0xf]
          %v1025 = vld [vmem:[#allocation10 + $0x30] sm:$0xf]
          %v1026 = vld [vmem:[#allocation10 + $0x34] sm:$0xf]
          %v1027 = vld [vmem:[#allocation10 + $0x38] sm:$0xf]
          %v1028 = vld [vmem:[#allocation10 + $0x3c] sm:$0xf]
          %s1029 = sshra.s32 %s516, 3
          %s1030 = sand.u32 %s516, 7
          %s1031 = smul.addr %s1029, 4
          %s1032 = scalar_lea.vmem [#allocation3], %s1031
          %v1033 = vld [vmem:[%s1032] sm:$0xf]
          %v1034 = vld [vmem:[%s1032 + $0x4] sm:$0xf]
          %v1035 = vld [vmem:[%s1032 + $0x8] sm:$0xf]
          %v1036 = vld [vmem:[%s1032 + $0xc] sm:$0xf]
          %v1037 = vld [vmem:[#allocation11] sm:$0xf]
          %v1038 = vld [vmem:[#allocation11 + $0x4] sm:$0xf]
          %v1039 = vld [vmem:[#allocation11 + $0x8] sm:$0xf]
          %v1040 = vld [vmem:[#allocation11 + $0xc] sm:$0xf]
          %v1041 = vld [vmem:[#allocation11 + $0x10] sm:$0xf]
          %v1042 = vld [vmem:[#allocation11 + $0x14] sm:$0xf]
          %v1043 = vld [vmem:[#allocation11 + $0x18] sm:$0xf]
          %v1044 = vld [vmem:[#allocation11 + $0x1c] sm:$0xf]
          %v1045 = vld [vmem:[#allocation11 + $0x20] sm:$0xf]
          %v1046 = vld [vmem:[#allocation11 + $0x24] sm:$0xf]
          %v1047 = vld [vmem:[#allocation11 + $0x28] sm:$0xf]
          %v1048 = vld [vmem:[#allocation11 + $0x2c] sm:$0xf]
          %v1049 = vld [vmem:[#allocation11 + $0x30] sm:$0xf]
          %v1050 = vld [vmem:[#allocation11 + $0x34] sm:$0xf]
          %v1051 = vld [vmem:[#allocation11 + $0x38] sm:$0xf]
          %v1052 = vld [vmem:[#allocation11 + $0x3c] sm:$0xf]
          %v1057 = vunpack.c.l.b16 %v1033
          %v1058 = vunpack.c.l.b16 %v1034
          %v1059 = vunpack.c.l.b16 %v1035
          %v1060 = vunpack.c.l.b16 %v1036
          %v1061 = vpack.c.b16 %v1058, %v1057
          %v1062 = vpack.c.b16 %v1060, %v1059
          %v1081 = vunpack.c.l.b16 %v1037
          %v1082 = vunpack.c.l.b16 %v1038
          %v1083 = vunpack.c.l.b16 %v1039
          %v1084 = vunpack.c.l.b16 %v1040
          %v1085 = vunpack.c.l.b16 %v1041
          %v1086 = vunpack.c.l.b16 %v1042
          %v1087 = vunpack.c.l.b16 %v1043
          %v1088 = vunpack.c.l.b16 %v1044
          %v1089 = vunpack.c.l.b16 %v1045
          %v1090 = vunpack.c.l.b16 %v1046
          %v1091 = vunpack.c.l.b16 %v1047
          %v1092 = vunpack.c.l.b16 %v1048
          %v1093 = vunpack.c.l.b16 %v1049
          %v1094 = vunpack.c.l.b16 %v1050
          %v1095 = vunpack.c.l.b16 %v1051
          %v1096 = vunpack.c.l.b16 %v1052
          %v1097 = vpack.c.b16 %v1082, %v1081
          %v1098 = vpack.c.b16 %v1084, %v1083
          %v1099 = vpack.c.b16 %v1086, %v1085
          %v1100 = vpack.c.b16 %v1088, %v1087
          %v1101 = vpack.c.b16 %v1090, %v1089
          %v1102 = vpack.c.b16 %v1092, %v1091
          %v1103 = vpack.c.b16 %v1094, %v1093
          %v1104 = vpack.c.b16 %v1096, %v1095
          %1113 = vmatpush.bf16.msra.mxu0 %v1104
          %1114 = vmatpush.bf16.msra.mxu0 %v1103
          %1115 = vmatpush.bf16.msra.mxu0 %v1102
          %1116 = vmatpush.bf16.msra.mxu0 %v1101
          %1117 = vmatpush.bf16.msra.mxu0 %v1100
          %1118 = vmatpush.bf16.msra.mxu0 %v1099
          %1119 = vmatpush.bf16.msra.mxu0 %v1098
          %1120 = vmatpush.bf16.msra.mxu0 %v1097
          %1121 = vmatmul.bf16.gmra.mxu0 %v1061
          %v1122 = vpop.f32.mrf.mxu0
          %v1123 = vadd.f32 0.0, %v1122
          %v1124 = vpop.f32.mrf.mxu0
          %v1125 = vadd.f32 0.0, %v1124
          %1126 = vmatmul.bf16.gmra.mxu0 %v1062
          %v1127 = vpop.f32.mrf.mxu0
          %v1128 = vadd.f32 0.0, %v1127
          %v1129 = vpop.f32.mrf.mxu0
          %v1130 = vadd.f32 0.0, %v1129
          %1131 = vdwg.mxu0
          %v1148 = vunpack.c.l.b16 %v1013
          %v1149 = vunpack.c.l.b16 %v1014
          %v1150 = vunpack.c.l.b16 %v1015
          %v1151 = vunpack.c.l.b16 %v1016
          %v1152 = vunpack.c.l.b16 %v1017
          %v1153 = vunpack.c.l.b16 %v1018
          %v1154 = vunpack.c.l.b16 %v1019
          %v1155 = vunpack.c.l.b16 %v1020
          %v1156 = vunpack.c.l.b16 %v1021
          %v1157 = vunpack.c.l.b16 %v1022
          %v1158 = vunpack.c.l.b16 %v1023
          %v1159 = vunpack.c.l.b16 %v1024
          %v1160 = vunpack.c.l.b16 %v1025
          %v1161 = vunpack.c.l.b16 %v1026
          %v1162 = vunpack.c.l.b16 %v1027
          %v1163 = vunpack.c.l.b16 %v1028
          %v1164 = vpack.c.b16 %v1149, %v1148
          %v1165 = vpack.c.b16 %v1151, %v1150
          %v1166 = vpack.c.b16 %v1153, %v1152
          %v1167 = vpack.c.b16 %v1155, %v1154
          %v1168 = vpack.c.b16 %v1157, %v1156
          %v1169 = vpack.c.b16 %v1159, %v1158
          %v1170 = vpack.c.b16 %v1161, %v1160
          %v1171 = vpack.c.b16 %v1163, %v1162
          %1180 = vmatpush.bf16.msra.mxu0 %v1171
          %1181 = vmatpush.bf16.msra.mxu0 %v1170
          %1182 = vmatpush.bf16.msra.mxu0 %v1169
          %1183 = vmatpush.bf16.msra.mxu0 %v1168
          %1184 = vmatpush.bf16.msra.mxu0 %v1167
          %1185 = vmatpush.bf16.msra.mxu0 %v1166
          %1186 = vmatpush.bf16.msra.mxu0 %v1165
          %1187 = vmatpush.bf16.msra.mxu0 %v1164
          %1188 = vmatmul.bf16.gmra.mxu0 %v1011
          %v1189 = vpop.f32.mrf.mxu0
          %v1190 = vadd.f32 %v1123, %v1189
          %v1191 = vpop.f32.mrf.mxu0
          %v1192 = vadd.f32 %v1125, %v1191
          %1193 = vmatmul.bf16.gmra.mxu0 %v1012
          %v1194 = vpop.f32.mrf.mxu0
          %v1195 = vadd.f32 %v1128, %v1194
          %v1196 = vpop.f32.mrf.mxu0
          %v1197 = vadd.f32 %v1130, %v1196
          %1198 = vdwg.mxu0
          %v1199 = vld [vmem:[%s8] sm:$0x1]
          %v1201 = vperm.slane %v1199, 0
          %v1203 = vadd.f32 %v1190, %v1201
          %v1204 = vadd.f32 %v1192, %v1201
          %v1205 = vadd.f32 %v1195, %v1201
          %v1206 = vadd.f32 %v1197, %v1201
          %v1207 = vlaneseq
          %v1208 = vand.u32 %v1207, 127
          %vm1209 = vcmp.lt.s32.totalorder %v1208, 4
          %v1210 = vsel %vm1209, %v1203, -inf
          %v1211 = vsel %vm1209, %v1204, -inf
          %v1212 = vsel %vm1209, %v1205, -inf
          %v1213 = vsel %vm1209, %v1206, -inf
          %1214 = vmax.xlane.f32.xlu0 %v1210
          %v1215 = vpop.xlane.xlu0 %1214
          %1216 = vmax.xlane.f32.xlu0 %v1211
          %v1217 = vpop.xlane.xlu0 %1216
          %1218 = vmax.xlane.f32.xlu0 %v1212
          %v1219 = vpop.xlane.xlu0 %1218
          %1220 = vmax.xlane.f32.xlu0 %v1213
          %v1221 = vpop.xlane.xlu0 %1220
          %v1222 = vsub.f32 %v1210, %v1215
          %v1223 = vsub.f32 %v1211, %v1217
          %v1224 = vsub.f32 %v1212, %v1219
          %v1225 = vsub.f32 %v1213, %v1221
          %v1226 = vmul.f32 %v1222, 1.442695
          %v1227 = vpow.pop %v1226
          %v1228 = vmul.f32 %v1223, 1.442695
          %v1229 = vpow.pop %v1228
          %v1230 = vmul.f32 %v1224, 1.442695
          %v1231 = vpow.pop %v1230
          %v1232 = vmul.f32 %v1225, 1.442695
          %v1233 = vpow.pop %v1232
          %1234 = vadd.xlane.f32.xlu0 %v1227
          %v1235 = vpop.xlane.xlu0 %1234
          %1236 = vadd.xlane.f32.xlu0 %v1229
          %v1237 = vpop.xlane.xlu0 %1236
          %1238 = vadd.xlane.f32.xlu0 %v1231
          %v1239 = vpop.xlane.xlu0 %1238
          %1240 = vadd.xlane.f32.xlu0 %v1233
          %v1241 = vpop.xlane.xlu0 %1240
          %v1242 = vrcp.pop %v1235
          %v1243 = vmul.f32 %v1235, %v1242
          %v1244 = vsub.f32 1.0, %v1243
          %v1245 = vmul.f32 %v1242, %v1244
          %v1246 = vadd.f32 %v1242, %v1245
          %vm1247 = vweird.f32 %v1235
          %vm1248 = vweird.f32 %v1242
          %vm1249 = vmor %vm1247, %vm1248
          %v1250 = vsel %vm1249, %v1242, %v1246
          %v1251 = vand.u32 2147483647, %v1235
          %vm1252 = vcmp.eq.f32.partialorder %v1251, 8.507059e+37
          %v1253 = vand.u32 %v1235, 2147483648
          %v1254 = vor.u32 1.1754944e-38, %v1253
          %v1255 = vsel %vm1252, %v1254, %v1250
          %v1256 = vmul.f32 %v1227, %v1255
          %v1257 = vrcp.pop %v1237
          %v1258 = vmul.f32 %v1237, %v1257
          %v1259 = vsub.f32 1.0, %v1258
          %v1260 = vmul.f32 %v1257, %v1259
          %v1261 = vadd.f32 %v1257, %v1260
          %vm1262 = vweird.f32 %v1237
          %vm1263 = vweird.f32 %v1257
          %vm1264 = vmor %vm1262, %vm1263
          %v1265 = vsel %vm1264, %v1257, %v1261
          %v1266 = vand.u32 2147483647, %v1237
          %vm1267 = vcmp.eq.f32.partialorder %v1266, 8.507059e+37
          %v1268 = vand.u32 %v1237, 2147483648
          %v1269 = vor.u32 1.1754944e-38, %v1268
          %v1270 = vsel %vm1267, %v1269, %v1265
          %v1271 = vmul.f32 %v1229, %v1270
          %v1272 = vrcp.pop %v1239
          %v1273 = vmul.f32 %v1239, %v1272
          %v1274 = vsub.f32 1.0, %v1273
          %v1275 = vmul.f32 %v1272, %v1274
          %v1276 = vadd.f32 %v1272, %v1275
          %vm1277 = vweird.f32 %v1239
          %vm1278 = vweird.f32 %v1272
          %vm1279 = vmor %vm1277, %vm1278
          %v1280 = vsel %vm1279, %v1272, %v1276
          %v1281 = vand.u32 2147483647, %v1239
          %vm1282 = vcmp.eq.f32.partialorder %v1281, 8.507059e+37
          %v1283 = vand.u32 %v1239, 2147483648
          %v1284 = vor.u32 1.1754944e-38, %v1283
          %v1285 = vsel %vm1282, %v1284, %v1280
          %v1286 = vmul.f32 %v1231, %v1285
          %v1287 = vrcp.pop %v1241
          %v1288 = vmul.f32 %v1241, %v1287
          %v1289 = vsub.f32 1.0, %v1288
          %v1290 = vmul.f32 %v1287, %v1289
          %v1291 = vadd.f32 %v1287, %v1290
          %vm1292 = vweird.f32 %v1241
          %vm1293 = vweird.f32 %v1287
          %vm1294 = vmor %vm1292, %vm1293
          %v1295 = vsel %vm1294, %v1287, %v1291
          %v1296 = vand.u32 2147483647, %v1241
          %vm1297 = vcmp.eq.f32.partialorder %v1296, 8.507059e+37
          %v1298 = vand.u32 %v1241, 2147483648
          %v1299 = vor.u32 1.1754944e-38, %v1298
          %v1300 = vsel %vm1297, %v1299, %v1295
          %v1301 = vmul.f32 %v1233, %v1300
          %v1302 = vld [vmem:[#allocation13] sm:$0xff]
          %v1303 = vld [vmem:[#allocation13 + $0x8] sm:$0xff]
          %v1304 = vld [vmem:[#allocation13 + $0x10] sm:$0xff]
          %v1305 = vld [vmem:[#allocation13 + $0x18] sm:$0xff]
          %v1306 = vld [vmem:[#allocation13 + $0x20] sm:$0xff]
          %v1307 = vld [vmem:[#allocation13 + $0x28] sm:$0xff]
          %v1308 = vld [vmem:[#allocation13 + $0x30] sm:$0xff]
          %v1309 = vld [vmem:[#allocation13 + $0x38] sm:$0xff]
          %v1310 = vld [vmem:[#allocation13 + $0x40] sm:$0xff]
          %v1311 = vld [vmem:[#allocation13 + $0x48] sm:$0xff]
          %v1312 = vld [vmem:[#allocation13 + $0x50] sm:$0xff]
          %v1313 = vld [vmem:[#allocation13 + $0x58] sm:$0xff]
          %v1314 = vld [vmem:[#allocation13 + $0x60] sm:$0xff]
          %v1315 = vld [vmem:[#allocation13 + $0x68] sm:$0xff]
          %v1316 = vld [vmem:[#allocation13 + $0x70] sm:$0xff]
          %v1317 = vld [vmem:[#allocation13 + $0x78] sm:$0xff]
          %1318 = vmatpush.msra.mxu0 %v1317
          %1319 = vmatpush.msra.mxu0 %v1316
          %1320 = vmatpush.msra.mxu0 %v1315
          %1321 = vmatpush.msra.mxu0 %v1314
          %1322 = vmatpush.msra.mxu0 %v1313
          %1323 = vmatpush.msra.mxu0 %v1312
          %1324 = vmatpush.msra.mxu0 %v1311
          %1325 = vmatpush.msra.mxu0 %v1310
          %1326 = vmatpush.msra.mxu0 %v1309
          %1327 = vmatpush.msra.mxu0 %v1308
          %1328 = vmatpush.msra.mxu0 %v1307
          %1329 = vmatpush.msra.mxu0 %v1306
          %1330 = vmatpush.msra.mxu0 %v1305
          %1331 = vmatpush.msra.mxu0 %v1304
          %1332 = vmatpush.msra.mxu0 %v1303
          %1333 = vmatpush.msra.mxu0 %v1302
          %1334 = vmatmul.f32.gmra.mxu0 %v1256
          %v1335 = vpop.f32.mrf.mxu0
          %v1336 = vadd.f32 0.0, %v1335
          %1337 = vmatmul.f32.gmra.mxu0 %v1271
          %v1338 = vpop.f32.mrf.mxu0
          %v1339 = vadd.f32 0.0, %v1338
          %1340 = vmatmul.f32.gmra.mxu0 %v1286
          %v1341 = vpop.f32.mrf.mxu0
          %v1342 = vadd.f32 0.0, %v1341
          %1343 = vmatmul.f32.gmra.mxu0 %v1301
          %v1344 = vpop.f32.mrf.mxu0
          %v1345 = vadd.f32 0.0, %v1344
          %1346 = vdwg.mxu0
          %s1347 = scalar_lea.vmem [#allocation14], %s516
          %1348 = vst [vmem:[%s1347] sm:$0xff] %v1256
          %1349 = vst [vmem:[%s1347 + $0x8] sm:$0xff] %v1271
          %1350 = vst [vmem:[%s1347 + $0x10] sm:$0xff] %v1286
          %1351 = vst [vmem:[%s1347 + $0x18] sm:$0xff] %v1301
          %s1352 = scalar_lea.vmem [#allocation15], %s516
          %1353 = vst [vmem:[%s1352] sm:$0xff] %v1336
          %1354 = vst [vmem:[%s1352 + $0x8] sm:$0xff] %v1339
          %1355 = vst [vmem:[%s1352 + $0x10] sm:$0xff] %v1342
          %1356 = vst [vmem:[%s1352 + $0x18] sm:$0xff] %v1345
          %1357 = vset.pattern.permute.xlu0 0
          %1358 = vperm.xlu0 %1357, %v517
          %v1359 = vpop.permute.xlu0 %1358
          %1361 = vset.pattern.permute.xlu0 0
          %1362 = vperm.xlu0 %1361, %v518
          %v1363 = vpop.permute.xlu0 %1362
          %1365 = vset.pattern.permute.xlu0 0
          %1366 = vperm.xlu0 %1365, %v519
          %v1367 = vpop.permute.xlu0 %1366
          %1369 = vset.pattern.permute.xlu0 0
          %1370 = vperm.xlu0 %1369, %v520
          %v1371 = vpop.permute.xlu0 %1370
          %v1373 = vmul.f32 %v1359, %v1336
          %v1374 = vmul.f32 %v1363, %v1339
          %v1375 = vmul.f32 %v1367, %v1342
          %v1376 = vmul.f32 %v1371, %v1345
          %v1377 = vpack.c.bf16 %v1373, %v1373
          %v1378 = vpack.c.bf16 %v1374, %v1374
          %v1379 = vpack.c.bf16 %v1375, %v1375
          %v1380 = vpack.c.bf16 %v1376, %v1376
          %s1381 = smul.addr %s1029, 4
          %s1382 = scalar_lea.vmem [#allocation4], %s1381
          %1383 = vst [vmem:[%s1382] sm:$0xf] %v1377
          %1384 = vst [vmem:[%s1382 + $0x4] sm:$0xf] %v1378
          %1385 = vst [vmem:[%s1382 + $0x8] sm:$0xf] %v1379
          %1386 = vst [vmem:[%s1382 + $0xc] sm:$0xf] %v1380
        $region92: #{tpu_custom_call.1} parent=59 // pred_fallthru
          _
        %p1387 = scmp.eq.s32.totalorder %s33, 3
        // Predicated region
        $region93: #{tpu_custom_call.1} parent=59 // pred_check
          %p1388 = pneg %p1387
        $region94: #{tpu_custom_call.1} parent=59 // pred_check_branch
          %1390 = sbr.rel (%p1388) target = $region96
        $region95: #{tpu_custom_call.1} parent=59 // pred_region
          %v1391 = vld [vmem:[#allocation4] sm:$0xf]
          %v1392 = vld [vmem:[#allocation4 + $0x4] sm:$0xf]
          %v1393 = vld [vmem:[#allocation4 + $0x8] sm:$0xf]
          %v1394 = vld [vmem:[#allocation4 + $0xc] sm:$0xf]
          %v1399 = vunpack.c.l.b16 %v521
          %v1400 = vunpack.c.l.b16 %v522
          %v1401 = vunpack.c.l.b16 %v523
          %v1402 = vunpack.c.l.b16 %v524
          %v1403 = vpack.c.b16 %v1400, %v1399
          %v1404 = vpack.c.b16 %v1402, %v1401
          %v1409 = vunpack.c.l.b16 %v1391
          %v1410 = vunpack.c.l.b16 %v1392
          %v1411 = vunpack.c.l.b16 %v1393
          %v1412 = vunpack.c.l.b16 %v1394
          %v1413 = vpack.c.b16 %v1410, %v1409
          %v1414 = vpack.c.b16 %v1412, %v1411
          %vm1417 = vcmask 261120
          %v1419 = vsel %vm1417, %v1403, 0
          %v1422 = vsel %vm1417, %v1404, 0
          %1424 = vmatpush.bf16.msra.mxu0 0
          %1425 = vmatpush.bf16.msra.mxu0 0
          %1426 = vmatpush.bf16.msra.mxu0 0
          %1427 = vmatpush.bf16.msra.mxu0 0
          %1428 = vmatpush.bf16.msra.mxu0 0
          %1429 = vmatpush.bf16.msra.mxu0 0
          %1430 = vmatpush.bf16.msra.mxu0 %v1414
          %1431 = vmatpush.bf16.msra.mxu0 %v1413
          %1432 = vmatmul.bf16.gmra.mxu0 %v1419
          %v1433 = vpop.f32.mrf.mxu0
          %v1434 = vadd.f32 0.0, %v1433
          %v1435 = vpop.f32.mrf.mxu0
          %v1436 = vadd.f32 0.0, %v1435
          %1437 = vmatmul.bf16.gmra.mxu0 %v1422
          %v1438 = vpop.f32.mrf.mxu0
          %v1439 = vadd.f32 0.0, %v1438
          %v1440 = vpop.f32.mrf.mxu0
          %v1441 = vadd.f32 0.0, %v1440
          %1442 = vdwg.mxu0
          %1444 = vset.pattern.permute.xlu0 0
          %1445 = vperm.xlu0 %1444, %v517
          %v1446 = vpop.permute.xlu0 %1445
          %1449 = vset.pattern.permute.xlu0 0
          %1450 = vperm.xlu0 %1449, %v518
          %v1451 = vpop.permute.xlu0 %1450
          %1454 = vset.pattern.permute.xlu0 0
          %1455 = vperm.xlu0 %1454, %v519
          %v1456 = vpop.permute.xlu0 %1455
          %1459 = vset.pattern.permute.xlu0 0
          %1460 = vperm.xlu0 %1459, %v520
          %v1461 = vpop.permute.xlu0 %1460
          %v1463 = vmul.f32 %v1446, %v1434
          %v1464 = vmul.f32 %v1451, %v1436
          %v1465 = vmul.f32 %v1456, %v1439
          %v1466 = vmul.f32 %v1461, %v1441
          %v1467 = vlaneseq
          %v1468 = vand.u32 %v1467, 127
          %vm1469 = vcmp.lt.s32.totalorder %v1468, 4
          %v1470 = vsel %vm1469, %v1463, -inf
          %v1471 = vsel %vm1469, %v1464, -inf
          %v1472 = vsel %vm1469, %v1465, -inf
          %v1473 = vsel %vm1469, %v1466, -inf
          %1474 = vmax.xlane.f32.xlu0 %v1470
          %v1475 = vpop.xlane.xlu0 %1474
          %1476 = vmax.xlane.f32.xlu0 %v1471
          %v1477 = vpop.xlane.xlu0 %1476
          %1478 = vmax.xlane.f32.xlu0 %v1472
          %v1479 = vpop.xlane.xlu0 %1478
          %1480 = vmax.xlane.f32.xlu0 %v1473
          %v1481 = vpop.xlane.xlu0 %1480
          %v1482 = vsub.f32 %v1470, %v1475
          %v1483 = vsub.f32 %v1471, %v1477
          %v1484 = vsub.f32 %v1472, %v1479
          %v1485 = vsub.f32 %v1473, %v1481
          %v1486 = vmul.f32 %v1482, 1.442695
          %v1487 = vpow.pop %v1486
          %v1488 = vmul.f32 %v1483, 1.442695
          %v1489 = vpow.pop %v1488
          %v1490 = vmul.f32 %v1484, 1.442695
          %v1491 = vpow.pop %v1490
          %v1492 = vmul.f32 %v1485, 1.442695
          %v1493 = vpow.pop %v1492
          %1494 = vadd.xlane.f32.xlu0 %v1487
          %v1495 = vpop.xlane.xlu0 %1494
          %1496 = vadd.xlane.f32.xlu0 %v1489
          %v1497 = vpop.xlane.xlu0 %1496
          %1498 = vadd.xlane.f32.xlu0 %v1491
          %v1499 = vpop.xlane.xlu0 %1498
          %1500 = vadd.xlane.f32.xlu0 %v1493
          %v1501 = vpop.xlane.xlu0 %1500
          %v1502 = vrcp.pop %v1495
          %v1503 = vmul.f32 %v1495, %v1502
          %v1504 = vsub.f32 1.0, %v1503
          %v1505 = vmul.f32 %v1502, %v1504
          %v1506 = vadd.f32 %v1502, %v1505
          %vm1507 = vweird.f32 %v1495
          %vm1508 = vweird.f32 %v1502
          %vm1509 = vmor %vm1507, %vm1508
          %v1510 = vsel %vm1509, %v1502, %v1506
          %v1511 = vand.u32 2147483647, %v1495
          %vm1512 = vcmp.eq.f32.partialorder %v1511, 8.507059e+37
          %v1513 = vand.u32 %v1495, 2147483648
          %v1514 = vor.u32 1.1754944e-38, %v1513
          %v1515 = vsel %vm1512, %v1514, %v1510
          %v1516 = vmul.f32 %v1487, %v1515
          %v1517 = vrcp.pop %v1497
          %v1518 = vmul.f32 %v1497, %v1517
          %v1519 = vsub.f32 1.0, %v1518
          %v1520 = vmul.f32 %v1517, %v1519
          %v1521 = vadd.f32 %v1517, %v1520
          %vm1522 = vweird.f32 %v1497
          %vm1523 = vweird.f32 %v1517
          %vm1524 = vmor %vm1522, %vm1523
          %v1525 = vsel %vm1524, %v1517, %v1521
          %v1526 = vand.u32 2147483647, %v1497
          %vm1527 = vcmp.eq.f32.partialorder %v1526, 8.507059e+37
          %v1528 = vand.u32 %v1497, 2147483648
          %v1529 = vor.u32 1.1754944e-38, %v1528
          %v1530 = vsel %vm1527, %v1529, %v1525
          %v1531 = vmul.f32 %v1489, %v1530
          %v1532 = vrcp.pop %v1499
          %v1533 = vmul.f32 %v1499, %v1532
          %v1534 = vsub.f32 1.0, %v1533
          %v1535 = vmul.f32 %v1532, %v1534
          %v1536 = vadd.f32 %v1532, %v1535
          %vm1537 = vweird.f32 %v1499
          %vm1538 = vweird.f32 %v1532
          %vm1539 = vmor %vm1537, %vm1538
          %v1540 = vsel %vm1539, %v1532, %v1536
          %v1541 = vand.u32 2147483647, %v1499
          %vm1542 = vcmp.eq.f32.partialorder %v1541, 8.507059e+37
          %v1543 = vand.u32 %v1499, 2147483648
          %v1544 = vor.u32 1.1754944e-38, %v1543
          %v1545 = vsel %vm1542, %v1544, %v1540
          %v1546 = vmul.f32 %v1491, %v1545
          %v1547 = vrcp.pop %v1501
          %v1548 = vmul.f32 %v1501, %v1547
          %v1549 = vsub.f32 1.0, %v1548
          %v1550 = vmul.f32 %v1547, %v1549
          %v1551 = vadd.f32 %v1547, %v1550
          %vm1552 = vweird.f32 %v1501
          %vm1553 = vweird.f32 %v1547
          %vm1554 = vmor %vm1552, %vm1553
          %v1555 = vsel %vm1554, %v1547, %v1551
          %v1556 = vand.u32 2147483647, %v1501
          %vm1557 = vcmp.eq.f32.partialorder %v1556, 8.507059e+37
          %v1558 = vand.u32 %v1501, 2147483648
          %v1559 = vor.u32 1.1754944e-38, %v1558
          %v1560 = vsel %vm1557, %v1559, %v1555
          %v1561 = vmul.f32 %v1493, %v1560
          %s1562 = scalar_lea.vmem [#allocation17], %s516
          %1563 = vst [vmem:[%s1562] sm:$0xff] %v1516
          %1564 = vst [vmem:[%s1562 + $0x8] sm:$0xff] %v1531
          %1565 = vst [vmem:[%s1562 + $0x10] sm:$0xff] %v1546
          %1566 = vst [vmem:[%s1562 + $0x18] sm:$0xff] %v1561
        $region96: #{tpu_custom_call.1} parent=59 // pred_fallthru
          _
        // Predicated region
        $region97: #{tpu_custom_call.1} parent=59 // pred_check
          %p1567 = pneg %p274
        $region98: #{tpu_custom_call.1} parent=59 // pred_check_branch
          %1569 = sbr.rel (%p1567) target = $region100
        $region99: #{tpu_custom_call.1} parent=59 // pred_region
          %1571 = vsyncadd [#allocation7], 0
          %s1572 = sshll.u32 [#allocation14], 4
          %s1573 = int_to_ptr.vmem [resolvable:$true] %s1572
          %s1574 = sshll.u32 %s10, 4
          %s1575 = int_to_ptr.hbm [resolvable:$true] %s1574
          %1580 = dma.vmem_to_hbm [thread:$0]  %s1573, 512, %s1575, [#allocation7], 128, 128, 8
        $region100: #{tpu_custom_call.1} parent=59 // pred_fallthru
          _
        // Predicated region
        $region101: #{tpu_custom_call.1} parent=59 // pred_check
          %p1581 = pneg %p295
        $region102: #{tpu_custom_call.1} parent=59 // pred_check_branch
          %1583 = sbr.rel (%p1581) target = $region104
        $region103: #{tpu_custom_call.1} parent=59 // pred_region
          %1585 = vsyncadd [#allocation16], 0
          %s1586 = sshll.u32 [#allocation15], 4
          %s1587 = int_to_ptr.vmem [resolvable:$true] %s1586
          %s1588 = sshll.u32 %s11, 4
          %s1589 = int_to_ptr.hbm [resolvable:$true] %s1588
          %1594 = dma.vmem_to_hbm [thread:$0]  %s1587, 512, %s1589, [#allocation16], 128, 128, 8
        $region104: #{tpu_custom_call.1} parent=59 // pred_fallthru
          _
        // Predicated region
        $region105: #{tpu_custom_call.1} parent=59 // pred_check
          %p1595 = pneg %p316
        $region106: #{tpu_custom_call.1} parent=59 // pred_check_branch
          %1597 = sbr.rel (%p1595) target = $region108
        $region107: #{tpu_custom_call.1} parent=59 // pred_region
          %1599 = vsyncadd [#allocation16], 0
          %s1600 = sshll.u32 [#allocation17], 4
          %s1601 = int_to_ptr.vmem [resolvable:$true] %s1600
          %s1602 = sshll.u32 %s12, 4
          %s1603 = int_to_ptr.hbm [resolvable:$true] %s1602
          %1608 = dma.vmem_to_hbm [thread:$0]  %s1601, 512, %s1603, [#allocation16], 128, 128, 8
        $region108: #{tpu_custom_call.1} parent=59 // pred_fallthru
          _
        // Predicated region
        $region109: #{tpu_custom_call.1} parent=59 // pred_check
          %p1609 = pneg %p274
        $region110: #{tpu_custom_call.1} parent=59 // pred_check_branch
          %1611 = sbr.rel (%p1609) target = $region112
        $region111: #{tpu_custom_call.1} parent=59 // pred_region
          %1613 = dma.done [#allocation7], 512
        $region112: #{tpu_custom_call.1} parent=59 // pred_fallthru
          _
        // Predicated region
        $region113: #{tpu_custom_call.1} parent=59 // pred_check
          %p1614 = pneg %p295
        $region114: #{tpu_custom_call.1} parent=59 // pred_check_branch
          %1616 = sbr.rel (%p1614) target = $region116
        $region115: #{tpu_custom_call.1} parent=59 // pred_region
          %1618 = dma.done [#allocation16], 512
        $region116: #{tpu_custom_call.1} parent=59 // pred_fallthru
          _
        // Predicated region
        $region117: #{tpu_custom_call.1} parent=59 // pred_check
          %p1619 = pneg %p316
        $region118: #{tpu_custom_call.1} parent=59 // pred_check_branch
          %1621 = sbr.rel (%p1619) target = $region120
        $region119: #{tpu_custom_call.1} parent=59 // pred_region
          %1623 = dma.done [#allocation16], 512
        $region120: #{tpu_custom_call.1} parent=59 // pred_fallthru
          _
      $region60: #{tpu_custom_call.1} parent=5 // pred_fallthru
        _
      %p1624 = scmp.le.s32.totalorder 2, %s24
      // Predicated region
      $region121: #{tpu_custom_call.1} parent=5 // pred_check
        %p1625 = pneg %p1624
      $region122: #{tpu_custom_call.1} parent=5 // pred_check_branch
        %1627 = sbr.rel (%p1625) target = $region124
      $region123: #{tpu_custom_call.1} parent=5 // pred_region
        %s1628 = ssub.s32 %s24, 2
      $region124: #{tpu_custom_call.1} parent=5 // pred_fallthru
        _
    $region6: #{tpu_custom_call.1} parent=1 // loop_footer
      %s28 = sadd.s32 1, %s24
    $region7: #{tpu_custom_call.1} parent=1 // loop_footer_branch
      %23 = sbr.rel target = $region3
    $region8: #{tpu_custom_call.1} parent=1 // loop_exit
      _
    %1629 = vsyncpa [#allocation6], 1
    %s1630 = scalar_lea.sflag [#allocation6], 1
    %1631 = vsyncpa %s1630, 1
    %1632 = vsyncpa [#allocation9], 1
    %1633 = vsyncpa [#allocation12], 1
    %1634 = vsyncpa [#allocation7], 1
    %s1635 = scalar_lea.sflag [#allocation7], 1
    %1636 = vsyncpa %s1635, 1
    %1637 = vsyncpa [#allocation16], 1

</llo_original>
